<compile_context>
chip_gen: v7x
topology: tpu7x:2x2x1
jax: 0.10.0
libtpu: 0.0.40
codegen_flags: <defaults>
</compile_context>

<pallas_src>
import jax
import jax.numpy as jnp
from jax.experimental import pallas as pl
from jax.experimental.pallas import tpu as pltpu


# ---------------- host-side constant setup (static shapes only) -------------

def bilinear_matrix(out_size, in_size):
    """1-D interpolation matrix reproducing PyTorch bilinear resize with
    align_corners=False (the F.upsample / F.interpolate default)."""
    i = jnp.arange(out_size, dtype=jnp.float32)
    src = (i + 0.5) * (in_size / out_size) - 0.5
    src = jnp.maximum(src, 0.0)
    i0 = jnp.clip(jnp.floor(src).astype(jnp.int32), 0, in_size - 1)
    i1 = jnp.minimum(i0 + 1, in_size - 1)
    frac = src - i0.astype(jnp.float32)
    rows = jnp.arange(out_size)
    m = jnp.zeros((out_size, in_size), jnp.float32)
    m = m.at[rows, i0].add(1.0 - frac)
    m = m.at[rows, i1].add(frac)
    return m


def upsample_matrix(hin, win, hout, wout):
    """Per-image (Hin*Win, Hout*Wout) matrix U with x_flat @ U == flat(A @ X @ B^T)."""
    a = bilinear_matrix(hout, hin)            # (Hout, Hin)
    b = bilinear_matrix(wout, win)            # (Wout, Win)
    return jnp.kron(a.T, b.T)                 # (Hin*Win, Hout*Wout)


def edge_masks(h, w):
    """(2, h*w) f32 masks for the flat per-image layout:
    row 0: valid positions for dw=-1 taps (w != 0)
    row 1: valid positions for dw=+1 taps (w != W-1)."""
    wc = jnp.tile(jnp.arange(w, dtype=jnp.int32), h)
    left = (wc != 0).astype(jnp.float32)
    right = (wc != w - 1).astype(jnp.float32)
    return jnp.stack([left, right], axis=0)


# --------------------------- in-kernel depthwise 3x3 -------------------------

def _dw3x3_flat(x, w9_ref, mask_ref, pad_ref, W, L):
    """Depthwise 3x3 (stride 1, pad 1, no bias) on one image in flat (C, H*W) layout.

    The plane is written once into a halo-padded scratch; the 9 taps are static
    shifted slices.  Out-of-plane reads hit the zero halo; within-row wrap for the
    dw=+/-1 taps is removed with the precomputed (1, L) edge masks."""
    C = x.shape[0]
    P = W + 1
    # Halo-only zeroing (body is fully overwritten below).
    pad_ref[:, :P] = jnp.zeros((C, P), jnp.float32)
    pad_ref[:, P + L:] = jnp.zeros((C, P), jnp.float32)
    pad_ref[:, P:P + L] = x

    def column(dw):
        acc = None
        for dh in (-1, 0, 1):
            k = (dh + 1) * 3 + (dw + 1)
            s = dh * W + dw
            term = w9_ref[:, k:k + 1] * pad_ref[:, P + s:P + s + L]
            acc = term if acc is None else acc + term
        return acc

    out = column(0)
    out = out + mask_ref[0:1, :] * column(-1)   # one mask multiply per 3 taps
    out = out + mask_ref[1:2, :] * column(+1)
    return out


# --------------------------- fused Pallas forward ----------------------------

def fpn_forward(params, c1, c2, c3):
    N, C1, H1, W1 = c1.shape
    _, C2, H2, W2 = c2.shape
    _, C3, H3, W3 = c3.shape
    L1, L2, L3 = H1 * W1, H2 * W2, H3 * W3
    P1, P2, P3 = W1 + 1, W2 + 1, W3 + 1

    bf16 = jnp.bfloat16
    # Free reshapes only (no transposes): (N, C, H, W) -> (N, C, H*W).
    c1f = c1.reshape(N, C1, L1).astype(bf16)
    c2f = c2.reshape(N, C2, L2).astype(bf16)
    c3f = c3.reshape(N, C3, L3).astype(bf16)

    # Per-image bilinear-resize matrices (bf16 matmul operands, f32 accumulation).
    u32 = upsample_matrix(H3, W3, H2, W2).astype(bf16)   # (L3, L2)
    u21 = upsample_matrix(H2, W2, H1, W1).astype(bf16)   # (L2, L1), used twice
    u31 = upsample_matrix(H3, W3, H1, W1).astype(bf16)   # (L3, L1)

    m1, m2, m3 = edge_masks(H1, W1), edge_masks(H2, W2), edge_masks(H3, W3)

    def dot(a, b):
        return jnp.dot(a.astype(bf16), b.astype(bf16),
                       preferred_element_type=jnp.float32)

    def kernel(c1_ref, c2_ref, c3_ref,
               top_w_ref, top_b_ref, lat1_w_ref, lat1_b_ref,
               lat2_w_ref, lat2_b_ref,
               u32_ref, u21_ref, u31_ref,
               dw1_ref, pw1_ref, dw2_ref, pw2_ref, dw3_ref, pw3_ref,
               m1_ref, m2_ref, m3_ref,
               o_ref, pad1_ref, pad2_ref, pad3_ref):
        # 1x1 top / lateral convolutions (channel matmuls, lane-dense operands).
        p3 = dot(top_w_ref[...], c3_ref[...]) + top_b_ref[...]        # (C3, L3)
        lat2 = dot(lat2_w_ref[...], c2_ref[...]) + lat2_b_ref[...]    # (C3, L2)
        lat1 = dot(lat1_w_ref[...], c1_ref[...]) + lat1_b_ref[...]    # (C3, L1)

        # Top-down pathway: per-image bilinear upsample (one matmul each) + add.
        p2 = dot(p3, u32_ref[...]) + lat2                              # (C3, L2)
        p1 = dot(p2, u21_ref[...]) + lat1                              # (C3, L1)

        # smooth{3,2,1}: depthwise 3x3 then bias-free pointwise 1x1.
        d3 = _dw3x3_flat(p3, dw3_ref, m3_ref, pad3_ref, W3, L3)
        d2 = _dw3x3_flat(p2, dw2_ref, m2_ref, pad2_ref, W2, L2)
        d1 = _dw3x3_flat(p1, dw1_ref, m1_ref, pad1_ref, W1, L1)
        q3 = dot(pw3_ref[...], d3)
        q2 = dot(pw2_ref[...], d2)
        q1 = dot(pw1_ref[...], d1)

        # fpn_head: q1 + up(q2 -> L1) + up(q3 -> L1), reusing resident U matrices.
        o_ref[...] = q1 + dot(q2, u21_ref[...]) + dot(q3, u31_ref[...])

    def const(shape):
        # Read-only operand: constant block index -> fetched once, VMEM-resident.
        return pl.BlockSpec(shape, lambda n, _r=len(shape): (0,) * _r)

    grid_spec = pltpu.PrefetchScalarGridSpec(
        num_scalar_prefetch=0,
        grid=(N,),
        in_specs=[
            pl.BlockSpec((None, C1, L1), lambda n: (n, 0, 0)),   # c1 per-image block
            pl.BlockSpec((None, C2, L2), lambda n: (n, 0, 0)),   # c2
            pl.BlockSpec((None, C3, L3), lambda n: (n, 0, 0)),   # c3
            const((C3, C3)), const((C3, 1)),                     # toplayer  w, b
            const((C3, C1)), const((C3, 1)),                     # latlayer1 w, b
            const((C3, C2)), const((C3, 1)),                     # latlayer2 w, b
            const((L3, L2)), const((L2, L1)), const((L3, L1)),   # u32, u21, u31
            const((C3, 9)), const((C3, C3)),                     # smooth1 dw, pw
            const((C3, 9)), const((C3, C3)),                     # smooth2 dw, pw
            const((C3, 9)), const((C3, C3)),                     # smooth3 dw, pw
            const((2, L1)), const((2, L2)), const((2, L3)),      # edge masks
        ],
        out_specs=pl.BlockSpec((None, C3, L1), lambda n: (n, 0, 0)),
        scratch_shapes=[
            pltpu.VMEM((C3, L1 + 2 * P1), jnp.float32),
            pltpu.VMEM((C3, L2 + 2 * P2), jnp.float32),
            pltpu.VMEM((C3, L3 + 2 * P3), jnp.float32),
        ],
    )

    out_flat = pl.pallas_call(
        kernel,
        grid_spec=grid_spec,
        out_shape=jax.ShapeDtypeStruct((N, C3, L1), jnp.float32),
        compiler_params=pltpu.CompilerParams(
            dimension_semantics=("parallel",),
            vmem_limit_bytes=32 * 1024 * 1024,   # explicit budget, fits v7x's 64 MiB
        ),
    )(c1f, c2f, c3f,
      params["top_w"].astype(bf16), params["top_b"].reshape(C3, 1),
      params["lat1_w"].astype(bf16), params["lat1_b"].reshape(C3, 1),
      params["lat2_w"].astype(bf16), params["lat2_b"].reshape(C3, 1),
      u32, u21, u31,
      params["smooth1_dw"].reshape(C3, 9), params["smooth1_pw"].astype(bf16),
      params["smooth2_dw"].reshape(C3, 9), params["smooth2_pw"].astype(bf16),
      params["smooth3_dw"].reshape(C3, 9), params["smooth3_pw"].astype(bf16),
      m1, m2, m3)

    return out_flat.reshape(N, C3, H1, W1)      # free reshape, no transpose


# ---------------------------- synthetic parameters ---------------------------

def init_fpn_params(key, in_channels):
    """Deterministic synthetic parameters matching the nn.Module shapes."""
    c1, c2, c3 = in_channels
    ks = jax.random.split(key, 7)

    def u(k, shape, fan_in):
        bound = 1.0 / (fan_in ** 0.5)
        return jax.random.uniform(k, shape, jnp.float32, -bound, bound)

    params = {
        "top_w": u(ks[0], (c3, c3), c3), "top_b": u(ks[1], (c3,), c3),
        "lat1_w": u(ks[2], (c3, c1), c1), "lat1_b": u(ks[3], (c3,), c1),
        "lat2_w": u(ks[4], (c3, c2), c2), "lat2_b": u(ks[5], (c3,), c2),
    }
    for i, k in zip((1, 2, 3), jax.random.split(ks[6], 3)):
        kd, kp = jax.random.split(k)
        params[f"smooth{i}_dw"] = u(kd, (c3, 3, 3), 9)       # depthwise (groups=c3)
        params[f"smooth{i}_pw"] = u(kp, (c3, c3), c3)         # pointwise, no bias
    return params


# ----------------------------- pure-JAX reference ----------------------------
# Independent f32 reference: separable einsum resize per plane, pad+slice depthwise.

def fpn_forward_ref(params, c1, c2, c3):
    def conv_ref(x, w, b):
        return jnp.einsum("oc,nchw->nohw", w, x) + b[None, :, None, None]

    def dw_ref(x, w):
        xp = jnp.pad(x, ((0, 0), (0, 0), (1, 1), (1, 1)))
        H, W = x.shape[2], x.shape[3]
        acc = jnp.zeros_like(x)
        for kh in range(3):
            for kw in range(3):
                acc = acc + w[None, :, kh, kw, None, None] * xp[:, :, kh:kh + H, kw:kw + W]
        return acc

    def up_add_ref(x, y, a, bt):
        return jnp.einsum("oh,nchw,wp->ncop", a, x, bt) + y

    C3 = params["top_w"].shape[0]
    zero_b = jnp.zeros((C3,), jnp.float32)
    p3 = conv_ref(c3, params["top_w"], params["top_b"])
    lat2 = conv_ref(c2, params["lat2_w"], params["lat2_b"])
    lat1 = conv_ref(c1, params["lat1_w"], params["lat1_b"])
    a32 = bilinear_matrix(c2.shape[2], c3.shape[2])
    bt32 = bilinear_matrix(c2.shape[3], c3.shape[3]).T
    p2 = up_add_ref(p3, lat2, a32, bt32)
    a21 = bilinear_matrix(c1.shape[2], c2.shape[2])
    bt21 = bilinear_matrix(c1.shape[3], c2.shape[3]).T
    p1 = up_add_ref(p2, lat1, a21, bt21)

    def smooth(x, i):
        return conv_ref(dw_ref(x, params[f"smooth{i}_dw"]),
                        params[f"smooth{i}_pw"], zero_b)

    p3, p2, p1 = smooth(p3, 3), smooth(p2, 2), smooth(p1, 1)
    fuse = up_add_ref(p2, p1, a21, bt21)
    a31 = bilinear_matrix(c1.shape[2], c3.shape[2])
    bt31 = bilinear_matrix(c1.shape[3], c3.shape[3]).T
    fuse = up_add_ref(p3, fuse, a31, bt31)
    return fuse


# ----------------------------------- main ------------------------------------

if __name__ == "__main__":
    key = jax.random.PRNGKey(0)
    in_channels = [4, 6, 8]
    kp, k1, k2, k3 = jax.random.split(key, 4)
    params = init_fpn_params(kp, in_channels)

    N = 2
    c1 = jax.random.normal(k1, (N, in_channels[0], 16, 16), jnp.float32)
    c2 = jax.random.normal(k2, (N, in_channels[1], 8, 8), jnp.float32)
    c3 = jax.random.normal(k3, (N, in_channels[2], 4, 4), jnp.float32)

    out = jax.jit(fpn_forward)(params, c1, c2, c3)
    out = jax.block_until_ready(out)

    ref = fpn_forward_ref(params, c1, c2, c3)
    assert out.shape == (N, in_channels[2], 16, 16), out.shape
    max_err = float(jnp.max(jnp.abs(out - ref)))
    scale = max(1.0, float(jnp.max(jnp.abs(ref))))
    # bf16 matmul operands (f32 accumulation) -> relative tolerance.
    assert max_err < 3e-2 * scale, f"max abs err {max_err} (scale {scale})"
    print("KERNEL_OK")
</pallas_src>

<mosaic_0001>
module attributes {stable_mosaic.version = 11 : i64} {
  func.func private @main(%arg0: i32) attributes {dimension_semantics = [#tpu.dimension_semantics<core_parallel>], iteration_bounds = array<i64: 2>, tpu.core_type = #tpu.core_type<sc_scalar_subcore>, window_params = []} {
    return
  }
}

module attributes {stable_mosaic.version = 11 : i64} {
  func.func private @main(%arg0: i32) attributes {dimension_semantics = [#tpu.dimension_semantics<core_parallel>], iteration_bounds = array<i64: 2>, tpu.core_type = #tpu.core_type<sc_scalar_subcore>, window_params = []} {
    return
  }
}

module attributes {stable_mosaic.version = 11 : i64} {
  func.func @kernel(%arg0: i32, %arg1: memref<1x4x256xbf16, #tpu.memory_space<vmem>>, %arg2: memref<1x6x64xbf16, #tpu.memory_space<vmem>>, %arg3: memref<1x8x16xbf16, #tpu.memory_space<vmem>>, %arg4: memref<8x8xbf16, #tpu.memory_space<vmem>>, %arg5: memref<8x1xf32, #tpu.memory_space<vmem>>, %arg6: memref<8x4xbf16, #tpu.memory_space<vmem>>, %arg7: memref<8x1xf32, #tpu.memory_space<vmem>>, %arg8: memref<8x6xbf16, #tpu.memory_space<vmem>>, %arg9: memref<8x1xf32, #tpu.memory_space<vmem>>, %arg10: memref<16x64xbf16, #tpu.memory_space<vmem>>, %arg11: memref<64x256xbf16, #tpu.memory_space<vmem>>, %arg12: memref<16x256xbf16, #tpu.memory_space<vmem>>, %arg13: memref<8x9xf32, #tpu.memory_space<vmem>>, %arg14: memref<8x8xbf16, #tpu.memory_space<vmem>>, %arg15: memref<8x9xf32, #tpu.memory_space<vmem>>, %arg16: memref<8x8xbf16, #tpu.memory_space<vmem>>, %arg17: memref<8x9xf32, #tpu.memory_space<vmem>>, %arg18: memref<8x8xbf16, #tpu.memory_space<vmem>>, %arg19: memref<2x256xf32, #tpu.memory_space<vmem>>, %arg20: memref<2x64xf32, #tpu.memory_space<vmem>>, %arg21: memref<2x16xf32, #tpu.memory_space<vmem>>, %arg22: memref<1x8x256xf32, #tpu.memory_space<vmem>>, %arg23: memref<8x290xf32, #tpu.memory_space<vmem>>, %arg24: memref<8x82xf32, #tpu.memory_space<vmem>>, %arg25: memref<8x26xf32, #tpu.memory_space<vmem>>) attributes {dimension_semantics = [#tpu.dimension_semantics<parallel>], iteration_bounds = array<i64: 2>, scalar_prefetch = 0 : i64, scratch_operands = 3 : i64, tpu.core_type = #tpu.core_type<tc>, window_params = [{transform_indices = @transform_0, window_bounds = array<i64: 1, 4, 256>}, {transform_indices = @transform_1, window_bounds = array<i64: 1, 6, 64>}, {transform_indices = @transform_2, window_bounds = array<i64: 1, 8, 16>}, {pipeline_mode = #tpu.pipeline_mode<synchronous>, transform_indices = @transform_3, window_bounds = array<i64: 8, 8>}, {pipeline_mode = #tpu.pipeline_mode<synchronous>, transform_indices = @transform_4, window_bounds = array<i64: 8, 1>}, {pipeline_mode = #tpu.pipeline_mode<synchronous>, transform_indices = @transform_5, window_bounds = array<i64: 8, 4>}, {pipeline_mode = #tpu.pipeline_mode<synchronous>, transform_indices = @transform_6, window_bounds = array<i64: 8, 1>}, {pipeline_mode = #tpu.pipeline_mode<synchronous>, transform_indices = @transform_7, window_bounds = array<i64: 8, 6>}, {pipeline_mode = #tpu.pipeline_mode<synchronous>, transform_indices = @transform_8, window_bounds = array<i64: 8, 1>}, {pipeline_mode = #tpu.pipeline_mode<synchronous>, transform_indices = @transform_9, window_bounds = array<i64: 16, 64>}, {pipeline_mode = #tpu.pipeline_mode<synchronous>, transform_indices = @transform_10, window_bounds = array<i64: 64, 256>}, {pipeline_mode = #tpu.pipeline_mode<synchronous>, transform_indices = @transform_11, window_bounds = array<i64: 16, 256>}, {pipeline_mode = #tpu.pipeline_mode<synchronous>, transform_indices = @transform_12, window_bounds = array<i64: 8, 9>}, {pipeline_mode = #tpu.pipeline_mode<synchronous>, transform_indices = @transform_13, window_bounds = array<i64: 8, 8>}, {pipeline_mode = #tpu.pipeline_mode<synchronous>, transform_indices = @transform_14, window_bounds = array<i64: 8, 9>}, {pipeline_mode = #tpu.pipeline_mode<synchronous>, transform_indices = @transform_15, window_bounds = array<i64: 8, 8>}, {pipeline_mode = #tpu.pipeline_mode<synchronous>, transform_indices = @transform_16, window_bounds = array<i64: 8, 9>}, {pipeline_mode = #tpu.pipeline_mode<synchronous>, transform_indices = @transform_17, window_bounds = array<i64: 8, 8>}, {pipeline_mode = #tpu.pipeline_mode<synchronous>, transform_indices = @transform_18, window_bounds = array<i64: 2, 256>}, {pipeline_mode = #tpu.pipeline_mode<synchronous>, transform_indices = @transform_19, window_bounds = array<i64: 2, 64>}, {pipeline_mode = #tpu.pipeline_mode<synchronous>, transform_indices = @transform_20, window_bounds = array<i64: 2, 16>}, {transform_indices = @transform_21, window_bounds = array<i64: 1, 8, 256>}]} {
    %c0 = arith.constant 0 : index
    %c0_0 = arith.constant 0 : index
    %0 = vector.load %arg4[%c0, %c0_0] : memref<8x8xbf16, #tpu.memory_space<vmem>>, vector<8x8xbf16>
    %c0_1 = arith.constant 0 : index
    %c0_2 = arith.constant 0 : index
    %c0_3 = arith.constant 0 : index
    %1 = vector.load %arg3[%c0_1, %c0_2, %c0_3] : memref<1x8x16xbf16, #tpu.memory_space<vmem>>, vector<1x8x16xbf16>
    %2 = vector.shape_cast %1 : vector<1x8x16xbf16> to vector<8x16xbf16>
    %cst = arith.constant dense<0.000000e+00> : vector<8x16xf32>
    %3 = tpu.matmul %0, %2, %cst {dimension_numbers = #tpu.dot_dimension_numbers<[1], [0], [0], [1], [0, 0, 1, 1], [], []>} : vector<8x8xbf16>, vector<8x16xbf16>, vector<8x16xf32> -> vector<8x16xf32>
    %c0_4 = arith.constant 0 : index
    %c0_5 = arith.constant 0 : index
    %4 = vector.load %arg5[%c0_4, %c0_5] : memref<8x1xf32, #tpu.memory_space<vmem>>, vector<8x1xf32>
    %5 = vector.broadcast %4 : vector<8x1xf32> to vector<8x16xf32>
    %6 = arith.addf %3, %5 : vector<8x16xf32>
    %c0_6 = arith.constant 0 : index
    %c0_7 = arith.constant 0 : index
    %7 = vector.load %arg8[%c0_6, %c0_7] : memref<8x6xbf16, #tpu.memory_space<vmem>>, vector<8x6xbf16>
    %c0_8 = arith.constant 0 : index
    %c0_9 = arith.constant 0 : index
    %c0_10 = arith.constant 0 : index
    %8 = vector.load %arg2[%c0_8, %c0_9, %c0_10] : memref<1x6x64xbf16, #tpu.memory_space<vmem>>, vector<1x6x64xbf16>
    %9 = vector.shape_cast %8 : vector<1x6x64xbf16> to vector<6x64xbf16>
    %cst_11 = arith.constant dense<0.000000e+00> : vector<8x64xf32>
    %10 = tpu.matmul %7, %9, %cst_11 {dimension_numbers = #tpu.dot_dimension_numbers<[1], [0], [0], [1], [0, 0, 1, 1], [], []>} : vector<8x6xbf16>, vector<6x64xbf16>, vector<8x64xf32> -> vector<8x64xf32>
    %c0_12 = arith.constant 0 : index
    %c0_13 = arith.constant 0 : index
    %11 = vector.load %arg9[%c0_12, %c0_13] : memref<8x1xf32, #tpu.memory_space<vmem>>, vector<8x1xf32>
    %12 = vector.broadcast %11 : vector<8x1xf32> to vector<8x64xf32>
    %13 = arith.addf %10, %12 : vector<8x64xf32>
    %c0_14 = arith.constant 0 : index
    %c0_15 = arith.constant 0 : index
    %14 = vector.load %arg6[%c0_14, %c0_15] : memref<8x4xbf16, #tpu.memory_space<vmem>>, vector<8x4xbf16>
    %c0_16 = arith.constant 0 : index
    %c0_17 = arith.constant 0 : index
    %c0_18 = arith.constant 0 : index
    %15 = vector.load %arg1[%c0_16, %c0_17, %c0_18] : memref<1x4x256xbf16, #tpu.memory_space<vmem>>, vector<1x4x256xbf16>
    %16 = vector.shape_cast %15 : vector<1x4x256xbf16> to vector<4x256xbf16>
    %cst_19 = arith.constant dense<0.000000e+00> : vector<8x256xf32>
    %17 = tpu.matmul %14, %16, %cst_19 {dimension_numbers = #tpu.dot_dimension_numbers<[1], [0], [0], [1], [0, 0, 1, 1], [], []>} : vector<8x4xbf16>, vector<4x256xbf16>, vector<8x256xf32> -> vector<8x256xf32>
    %c0_20 = arith.constant 0 : index
    %c0_21 = arith.constant 0 : index
    %18 = vector.load %arg7[%c0_20, %c0_21] : memref<8x1xf32, #tpu.memory_space<vmem>>, vector<8x1xf32>
    %19 = vector.broadcast %18 : vector<8x1xf32> to vector<8x256xf32>
    %20 = arith.addf %17, %19 : vector<8x256xf32>
    %c0_22 = arith.constant 0 : index
    %c0_23 = arith.constant 0 : index
    %21 = vector.load %arg10[%c0_22, %c0_23] : memref<16x64xbf16, #tpu.memory_space<vmem>>, vector<16x64xbf16>
    %22 = arith.truncf %6 : vector<8x16xf32> to vector<8x16xbf16>
    %cst_24 = arith.constant dense<0.000000e+00> : vector<8x64xf32>
    %23 = tpu.matmul %22, %21, %cst_24 {dimension_numbers = #tpu.dot_dimension_numbers<[1], [0], [0], [1], [0, 0, 1, 1], [], []>} : vector<8x16xbf16>, vector<16x64xbf16>, vector<8x64xf32> -> vector<8x64xf32>
    %24 = arith.addf %23, %13 : vector<8x64xf32>
    %c0_25 = arith.constant 0 : index
    %c0_26 = arith.constant 0 : index
    %25 = vector.load %arg11[%c0_25, %c0_26] : memref<64x256xbf16, #tpu.memory_space<vmem>>, vector<64x256xbf16>
    %26 = arith.truncf %24 : vector<8x64xf32> to vector<8x64xbf16>
    %cst_27 = arith.constant dense<0.000000e+00> : vector<8x256xf32>
    %27 = tpu.matmul %26, %25, %cst_27 {dimension_numbers = #tpu.dot_dimension_numbers<[1], [0], [0], [1], [0, 0, 1, 1], [], []>} : vector<8x64xbf16>, vector<64x256xbf16>, vector<8x256xf32> -> vector<8x256xf32>
    %28 = arith.addf %27, %20 : vector<8x256xf32>
    %cst_28 = arith.constant 0.000000e+00 : f32
    %29 = vector.broadcast %cst_28 : f32 to vector<8x5xf32>
    %c0_29 = arith.constant 0 : index
    %c0_30 = arith.constant 0 : index
    %30 = vector.load %arg25[%c0_29, %c0_30] : memref<8x26xf32, #tpu.memory_space<vmem>>, vector<8x5xf32>
    tpu.vector_store %arg25[%c0_29, %c0_30], %29 {strides = array<i32>} : memref<8x26xf32, #tpu.memory_space<vmem>>, vector<8x5xf32>,
    %cst_31 = arith.constant 0.000000e+00 : f32
    %31 = vector.broadcast %cst_31 : f32 to vector<8x5xf32>
    %c0_32 = arith.constant 0 : index
    %c21 = arith.constant 21 : index
    %32 = vector.load %arg25[%c0_32, %c21] : memref<8x26xf32, #tpu.memory_space<vmem>>, vector<8x5xf32>
    tpu.vector_store %arg25[%c0_32, %c21], %31 {strides = array<i32>} : memref<8x26xf32, #tpu.memory_space<vmem>>, vector<8x5xf32>,
    %c0_33 = arith.constant 0 : index
    %c5 = arith.constant 5 : index
    %33 = vector.load %arg25[%c0_33, %c5] : memref<8x26xf32, #tpu.memory_space<vmem>>, vector<8x16xf32>
    tpu.vector_store %arg25[%c0_33, %c5], %6 {strides = array<i32>} : memref<8x26xf32, #tpu.memory_space<vmem>>, vector<8x16xf32>,
    %c0_34 = arith.constant 0 : index
    %c1 = arith.constant 1 : index
    %34 = vector.load %arg17[%c0_34, %c1] : memref<8x9xf32, #tpu.memory_space<vmem>>, vector<8x1xf32>
    %c0_35 = arith.constant 0 : index
    %c1_36 = arith.constant 1 : index
    %35 = vector.load %arg25[%c0_35, %c1_36] : memref<8x26xf32, #tpu.memory_space<vmem>>, vector<8x16xf32>
    %36 = vector.broadcast %34 : vector<8x1xf32> to vector<8x16xf32>
    %37 = arith.mulf %36, %35 : vector<8x16xf32>
    %c0_37 = arith.constant 0 : index
    %c4 = arith.constant 4 : index
    %38 = vector.load %arg17[%c0_37, %c4] : memref<8x9xf32, #tpu.memory_space<vmem>>, vector<8x1xf32>
    %c0_38 = arith.constant 0 : index
    %c5_39 = arith.constant 5 : index
    %39 = vector.load %arg25[%c0_38, %c5_39] : memref<8x26xf32, #tpu.memory_space<vmem>>, vector<8x16xf32>
    %40 = vector.broadcast %38 : vector<8x1xf32> to vector<8x16xf32>
    %41 = arith.mulf %40, %39 : vector<8x16xf32>
    %42 = arith.addf %37, %41 : vector<8x16xf32>
    %c0_40 = arith.constant 0 : index
    %c7 = arith.constant 7 : index
    %43 = vector.load %arg17[%c0_40, %c7] : memref<8x9xf32, #tpu.memory_space<vmem>>, vector<8x1xf32>
    %c0_41 = arith.constant 0 : index
    %c9 = arith.constant 9 : index
    %44 = vector.load %arg25[%c0_41, %c9] : memref<8x26xf32, #tpu.memory_space<vmem>>, vector<8x16xf32>
    %45 = vector.broadcast %43 : vector<8x1xf32> to vector<8x16xf32>
    %46 = arith.mulf %45, %44 : vector<8x16xf32>
    %47 = arith.addf %42, %46 : vector<8x16xf32>
    %c0_42 = arith.constant 0 : index
    %c0_43 = arith.constant 0 : index
    %48 = vector.load %arg21[%c0_42, %c0_43] : memref<2x16xf32, #tpu.memory_space<vmem>>, vector<1x16xf32>
    %c0_44 = arith.constant 0 : index
    %c0_45 = arith.constant 0 : index
    %49 = vector.load %arg17[%c0_44, %c0_45] : memref<8x9xf32, #tpu.memory_space<vmem>>, vector<8x1xf32>
    %c0_46 = arith.constant 0 : index
    %c0_47 = arith.constant 0 : index
    %50 = vector.load %arg25[%c0_46, %c0_47] : memref<8x26xf32, #tpu.memory_space<vmem>>, vector<8x16xf32>
    %51 = vector.broadcast %49 : vector<8x1xf32> to vector<8x16xf32>
    %52 = arith.mulf %51, %50 : vector<8x16xf32>
    %c0_48 = arith.constant 0 : index
    %c3 = arith.constant 3 : index
    %53 = vector.load %arg17[%c0_48, %c3] : memref<8x9xf32, #tpu.memory_space<vmem>>, vector<8x1xf32>
    %c0_49 = arith.constant 0 : index
    %c4_50 = arith.constant 4 : index
    %54 = vector.load %arg25[%c0_49, %c4_50] : memref<8x26xf32, #tpu.memory_space<vmem>>, vector<8x16xf32>
    %55 = vector.broadcast %53 : vector<8x1xf32> to vector<8x16xf32>
    %56 = arith.mulf %55, %54 : vector<8x16xf32>
    %57 = arith.addf %52, %56 : vector<8x16xf32>
    %c0_51 = arith.constant 0 : index
    %c6 = arith.constant 6 : index
    %58 = vector.load %arg17[%c0_51, %c6] : memref<8x9xf32, #tpu.memory_space<vmem>>, vector<8x1xf32>
    %c0_52 = arith.constant 0 : index
    %c8 = arith.constant 8 : index
    %59 = vector.load %arg25[%c0_52, %c8] : memref<8x26xf32, #tpu.memory_space<vmem>>, vector<8x16xf32>
    %60 = vector.broadcast %58 : vector<8x1xf32> to vector<8x16xf32>
    %61 = arith.mulf %60, %59 : vector<8x16xf32>
    %62 = arith.addf %57, %61 : vector<8x16xf32>
    %63 = vector.broadcast %48 : vector<1x16xf32> to vector<8x16xf32>
    %64 = arith.mulf %63, %62 : vector<8x16xf32>
    %65 = arith.addf %47, %64 : vector<8x16xf32>
    %c1_53 = arith.constant 1 : index
    %c0_54 = arith.constant 0 : index
    %66 = vector.load %arg21[%c1_53, %c0_54] : memref<2x16xf32, #tpu.memory_space<vmem>>, vector<1x16xf32>
    %c0_55 = arith.constant 0 : index
    %c2 = arith.constant 2 : index
    %67 = vector.load %arg17[%c0_55, %c2] : memref<8x9xf32, #tpu.memory_space<vmem>>, vector<8x1xf32>
    %c0_56 = arith.constant 0 : index
    %c2_57 = arith.constant 2 : index
    %68 = vector.load %arg25[%c0_56, %c2_57] : memref<8x26xf32, #tpu.memory_space<vmem>>, vector<8x16xf32>
    %69 = vector.broadcast %67 : vector<8x1xf32> to vector<8x16xf32>
    %70 = arith.mulf %69, %68 : vector<8x16xf32>
    %c0_58 = arith.constant 0 : index
    %c5_59 = arith.constant 5 : index
    %71 = vector.load %arg17[%c0_58, %c5_59] : memref<8x9xf32, #tpu.memory_space<vmem>>, vector<8x1xf32>
    %c0_60 = arith.constant 0 : index
    %c6_61 = arith.constant 6 : index
    %72 = vector.load %arg25[%c0_60, %c6_61] : memref<8x26xf32, #tpu.memory_space<vmem>>, vector<8x16xf32>
    %73 = vector.broadcast %71 : vector<8x1xf32> to vector<8x16xf32>
    %74 = arith.mulf %73, %72 : vector<8x16xf32>
    %75 = arith.addf %70, %74 : vector<8x16xf32>
    %c0_62 = arith.constant 0 : index
    %c8_63 = arith.constant 8 : index
    %76 = vector.load %arg17[%c0_62, %c8_63] : memref<8x9xf32, #tpu.memory_space<vmem>>, vector<8x1xf32>
    %c0_64 = arith.constant 0 : index
    %c10 = arith.constant 10 : index
    %77 = vector.load %arg25[%c0_64, %c10] : memref<8x26xf32, #tpu.memory_space<vmem>>, vector<8x16xf32>
    %78 = vector.broadcast %76 : vector<8x1xf32> to vector<8x16xf32>
    %79 = arith.mulf %78, %77 : vector<8x16xf32>
    %80 = arith.addf %75, %79 : vector<8x16xf32>
    %81 = vector.broadcast %66 : vector<1x16xf32> to vector<8x16xf32>
    %82 = arith.mulf %81, %80 : vector<8x16xf32>
    %83 = arith.addf %65, %82 : vector<8x16xf32>
    %cst_65 = arith.constant 0.000000e+00 : f32
    %84 = vector.broadcast %cst_65 : f32 to vector<8x9xf32>
    %c0_66 = arith.constant 0 : index
    %c0_67 = arith.constant 0 : index
    %85 = vector.load %arg24[%c0_66, %c0_67] : memref<8x82xf32, #tpu.memory_space<vmem>>, vector<8x9xf32>
    tpu.vector_store %arg24[%c0_66, %c0_67], %84 {strides = array<i32>} : memref<8x82xf32, #tpu.memory_space<vmem>>, vector<8x9xf32>,
    %cst_68 = arith.constant 0.000000e+00 : f32
    %86 = vector.broadcast %cst_68 : f32 to vector<8x9xf32>
    %c0_69 = arith.constant 0 : index
    %c73 = arith.constant 73 : index
    %87 = vector.load %arg24[%c0_69, %c73] : memref<8x82xf32, #tpu.memory_space<vmem>>, vector<8x9xf32>
    tpu.vector_store %arg24[%c0_69, %c73], %86 {strides = array<i32>} : memref<8x82xf32, #tpu.memory_space<vmem>>, vector<8x9xf32>,
    %c0_70 = arith.constant 0 : index
    %c9_71 = arith.constant 9 : index
    %88 = vector.load %arg24[%c0_70, %c9_71] : memref<8x82xf32, #tpu.memory_space<vmem>>, vector<8x64xf32>
    tpu.vector_store %arg24[%c0_70, %c9_71], %24 {strides = array<i32>} : memref<8x82xf32, #tpu.memory_space<vmem>>, vector<8x64xf32>,
    %c0_72 = arith.constant 0 : index
    %c1_73 = arith.constant 1 : index
    %89 = vector.load %arg15[%c0_72, %c1_73] : memref<8x9xf32, #tpu.memory_space<vmem>>, vector<8x1xf32>
    %c0_74 = arith.constant 0 : index
    %c1_75 = arith.constant 1 : index
    %90 = vector.load %arg24[%c0_74, %c1_75] : memref<8x82xf32, #tpu.memory_space<vmem>>, vector<8x64xf32>
    %91 = vector.broadcast %89 : vector<8x1xf32> to vector<8x64xf32>
    %92 = arith.mulf %91, %90 : vector<8x64xf32>
    %c0_76 = arith.constant 0 : index
    %c4_77 = arith.constant 4 : index
    %93 = vector.load %arg15[%c0_76, %c4_77] : memref<8x9xf32, #tpu.memory_space<vmem>>, vector<8x1xf32>
    %c0_78 = arith.constant 0 : index
    %c9_79 = arith.constant 9 : index
    %94 = vector.load %arg24[%c0_78, %c9_79] : memref<8x82xf32, #tpu.memory_space<vmem>>, vector<8x64xf32>
    %95 = vector.broadcast %93 : vector<8x1xf32> to vector<8x64xf32>
    %96 = arith.mulf %95, %94 : vector<8x64xf32>
    %97 = arith.addf %92, %96 : vector<8x64xf32>
    %c0_80 = arith.constant 0 : index
    %c7_81 = arith.constant 7 : index
    %98 = vector.load %arg15[%c0_80, %c7_81] : memref<8x9xf32, #tpu.memory_space<vmem>>, vector<8x1xf32>
    %c0_82 = arith.constant 0 : index
    %c17 = arith.constant 17 : index
    %99 = vector.load %arg24[%c0_82, %c17] : memref<8x82xf32, #tpu.memory_space<vmem>>, vector<8x64xf32>
    %100 = vector.broadcast %98 : vector<8x1xf32> to vector<8x64xf32>
    %101 = arith.mulf %100, %99 : vector<8x64xf32>
    %102 = arith.addf %97, %101 : vector<8x64xf32>
    %c0_83 = arith.constant 0 : index
    %c0_84 = arith.constant 0 : index
    %103 = vector.load %arg20[%c0_83, %c0_84] : memref<2x64xf32, #tpu.memory_space<vmem>>, vector<1x64xf32>
    %c0_85 = arith.constant 0 : index
    %c0_86 = arith.constant 0 : index
    %104 = vector.load %arg15[%c0_85, %c0_86] : memref<8x9xf32, #tpu.memory_space<vmem>>, vector<8x1xf32>
    %c0_87 = arith.constant 0 : index
    %c0_88 = arith.constant 0 : index
    %105 = vector.load %arg24[%c0_87, %c0_88] : memref<8x82xf32, #tpu.memory_space<vmem>>, vector<8x64xf32>
    %106 = vector.broadcast %104 : vector<8x1xf32> to vector<8x64xf32>
    %107 = arith.mulf %106, %105 : vector<8x64xf32>
    %c0_89 = arith.constant 0 : index
    %c3_90 = arith.constant 3 : index
    %108 = vector.load %arg15[%c0_89, %c3_90] : memref<8x9xf32, #tpu.memory_space<vmem>>, vector<8x1xf32>
    %c0_91 = arith.constant 0 : index
    %c8_92 = arith.constant 8 : index
    %109 = vector.load %arg24[%c0_91, %c8_92] : memref<8x82xf32, #tpu.memory_space<vmem>>, vector<8x64xf32>
    %110 = vector.broadcast %108 : vector<8x1xf32> to vector<8x64xf32>
    %111 = arith.mulf %110, %109 : vector<8x64xf32>
    %112 = arith.addf %107, %111 : vector<8x64xf32>
    %c0_93 = arith.constant 0 : index
    %c6_94 = arith.constant 6 : index
    %113 = vector.load %arg15[%c0_93, %c6_94] : memref<8x9xf32, #tpu.memory_space<vmem>>, vector<8x1xf32>
    %c0_95 = arith.constant 0 : index
    %c16 = arith.constant 16 : index
    %114 = vector.load %arg24[%c0_95, %c16] : memref<8x82xf32, #tpu.memory_space<vmem>>, vector<8x64xf32>
    %115 = vector.broadcast %113 : vector<8x1xf32> to vector<8x64xf32>
    %116 = arith.mulf %115, %114 : vector<8x64xf32>
    %117 = arith.addf %112, %116 : vector<8x64xf32>
    %118 = vector.broadcast %103 : vector<1x64xf32> to vector<8x64xf32>
    %119 = arith.mulf %118, %117 : vector<8x64xf32>
    %120 = arith.addf %102, %119 : vector<8x64xf32>
    %c1_96 = arith.constant 1 : index
    %c0_97 = arith.constant 0 : index
    %121 = vector.load %arg20[%c1_96, %c0_97] : memref<2x64xf32, #tpu.memory_space<vmem>>, vector<1x64xf32>
    %c0_98 = arith.constant 0 : index
    %c2_99 = arith.constant 2 : index
    %122 = vector.load %arg15[%c0_98, %c2_99] : memref<8x9xf32, #tpu.memory_space<vmem>>, vector<8x1xf32>
    %c0_100 = arith.constant 0 : index
    %c2_101 = arith.constant 2 : index
    %123 = vector.load %arg24[%c0_100, %c2_101] : memref<8x82xf32, #tpu.memory_space<vmem>>, vector<8x64xf32>
    %124 = vector.broadcast %122 : vector<8x1xf32> to vector<8x64xf32>
    %125 = arith.mulf %124, %123 : vector<8x64xf32>
    %c0_102 = arith.constant 0 : index
    %c5_103 = arith.constant 5 : index
    %126 = vector.load %arg15[%c0_102, %c5_103] : memref<8x9xf32, #tpu.memory_space<vmem>>, vector<8x1xf32>
    %c0_104 = arith.constant 0 : index
    %c10_105 = arith.constant 10 : index
    %127 = vector.load %arg24[%c0_104, %c10_105] : memref<8x82xf32, #tpu.memory_space<vmem>>, vector<8x64xf32>
    %128 = vector.broadcast %126 : vector<8x1xf32> to vector<8x64xf32>
    %129 = arith.mulf %128, %127 : vector<8x64xf32>
    %130 = arith.addf %125, %129 : vector<8x64xf32>
    %c0_106 = arith.constant 0 : index
    %c8_107 = arith.constant 8 : index
    %131 = vector.load %arg15[%c0_106, %c8_107] : memref<8x9xf32, #tpu.memory_space<vmem>>, vector<8x1xf32>
    %c0_108 = arith.constant 0 : index
    %c18 = arith.constant 18 : index
    %132 = vector.load %arg24[%c0_108, %c18] : memref<8x82xf32, #tpu.memory_space<vmem>>, vector<8x64xf32>
    %133 = vector.broadcast %131 : vector<8x1xf32> to vector<8x64xf32>
    %134 = arith.mulf %133, %132 : vector<8x64xf32>
    %135 = arith.addf %130, %134 : vector<8x64xf32>
    %136 = vector.broadcast %121 : vector<1x64xf32> to vector<8x64xf32>
    %137 = arith.mulf %136, %135 : vector<8x64xf32>
    %138 = arith.addf %120, %137 : vector<8x64xf32>
    %cst_109 = arith.constant 0.000000e+00 : f32
    %139 = vector.broadcast %cst_109 : f32 to vector<8x17xf32>
    %c0_110 = arith.constant 0 : index
    %c0_111 = arith.constant 0 : index
    %140 = vector.load %arg23[%c0_110, %c0_111] : memref<8x290xf32, #tpu.memory_space<vmem>>, vector<8x17xf32>
    tpu.vector_store %arg23[%c0_110, %c0_111], %139 {strides = array<i32>} : memref<8x290xf32, #tpu.memory_space<vmem>>, vector<8x17xf32>,
    %cst_112 = arith.constant 0.000000e+00 : f32
    %141 = vector.broadcast %cst_112 : f32 to vector<8x17xf32>
    %c0_113 = arith.constant 0 : index
    %c273 = arith.constant 273 : index
    %142 = vector.load %arg23[%c0_113, %c273] : memref<8x290xf32, #tpu.memory_space<vmem>>, vector<8x17xf32>
    tpu.vector_store %arg23[%c0_113, %c273], %141 {strides = array<i32>} : memref<8x290xf32, #tpu.memory_space<vmem>>, vector<8x17xf32>,
    %c0_114 = arith.constant 0 : index
    %c17_115 = arith.constant 17 : index
    %143 = vector.load %arg23[%c0_114, %c17_115] : memref<8x290xf32, #tpu.memory_space<vmem>>, vector<8x256xf32>
    tpu.vector_store %arg23[%c0_114, %c17_115], %28 {strides = array<i32>} : memref<8x290xf32, #tpu.memory_space<vmem>>, vector<8x256xf32>,
    %c0_116 = arith.constant 0 : index
    %c1_117 = arith.constant 1 : index
    %144 = vector.load %arg13[%c0_116, %c1_117] : memref<8x9xf32, #tpu.memory_space<vmem>>, vector<8x1xf32>
    %c0_118 = arith.constant 0 : index
    %c1_119 = arith.constant 1 : index
    %145 = vector.load %arg23[%c0_118, %c1_119] : memref<8x290xf32, #tpu.memory_space<vmem>>, vector<8x256xf32>
    %146 = vector.broadcast %144 : vector<8x1xf32> to vector<8x256xf32>
    %147 = arith.mulf %146, %145 : vector<8x256xf32>
    %c0_120 = arith.constant 0 : index
    %c4_121 = arith.constant 4 : index
    %148 = vector.load %arg13[%c0_120, %c4_121] : memref<8x9xf32, #tpu.memory_space<vmem>>, vector<8x1xf32>
    %c0_122 = arith.constant 0 : index
    %c17_123 = arith.constant 17 : index
    %149 = vector.load %arg23[%c0_122, %c17_123] : memref<8x290xf32, #tpu.memory_space<vmem>>, vector<8x256xf32>
    %150 = vector.broadcast %148 : vector<8x1xf32> to vector<8x256xf32>
    %151 = arith.mulf %150, %149 : vector<8x256xf32>
    %152 = arith.addf %147, %151 : vector<8x256xf32>
    %c0_124 = arith.constant 0 : index
    %c7_125 = arith.constant 7 : index
    %153 = vector.load %arg13[%c0_124, %c7_125] : memref<8x9xf32, #tpu.memory_space<vmem>>, vector<8x1xf32>
    %c0_126 = arith.constant 0 : index
    %c33 = arith.constant 33 : index
    %154 = vector.load %arg23[%c0_126, %c33] : memref<8x290xf32, #tpu.memory_space<vmem>>, vector<8x256xf32>
    %155 = vector.broadcast %153 : vector<8x1xf32> to vector<8x256xf32>
    %156 = arith.mulf %155, %154 : vector<8x256xf32>
    %157 = arith.addf %152, %156 : vector<8x256xf32>
    %c0_127 = arith.constant 0 : index
    %c0_128 = arith.constant 0 : index
    %158 = vector.load %arg19[%c0_127, %c0_128] : memref<2x256xf32, #tpu.memory_space<vmem>>, vector<1x256xf32>
    %c0_129 = arith.constant 0 : index
    %c0_130 = arith.constant 0 : index
    %159 = vector.load %arg13[%c0_129, %c0_130] : memref<8x9xf32, #tpu.memory_space<vmem>>, vector<8x1xf32>
    %c0_131 = arith.constant 0 : index
    %c0_132 = arith.constant 0 : index
    %160 = vector.load %arg23[%c0_131, %c0_132] : memref<8x290xf32, #tpu.memory_space<vmem>>, vector<8x256xf32>
    %161 = vector.broadcast %159 : vector<8x1xf32> to vector<8x256xf32>
    %162 = arith.mulf %161, %160 : vector<8x256xf32>
    %c0_133 = arith.constant 0 : index
    %c3_134 = arith.constant 3 : index
    %163 = vector.load %arg13[%c0_133, %c3_134] : memref<8x9xf32, #tpu.memory_space<vmem>>, vector<8x1xf32>
    %c0_135 = arith.constant 0 : index
    %c16_136 = arith.constant 16 : index
    %164 = vector.load %arg23[%c0_135, %c16_136] : memref<8x290xf32, #tpu.memory_space<vmem>>, vector<8x256xf32>
    %165 = vector.broadcast %163 : vector<8x1xf32> to vector<8x256xf32>
    %166 = arith.mulf %165, %164 : vector<8x256xf32>
    %167 = arith.addf %162, %166 : vector<8x256xf32>
    %c0_137 = arith.constant 0 : index
    %c6_138 = arith.constant 6 : index
    %168 = vector.load %arg13[%c0_137, %c6_138] : memref<8x9xf32, #tpu.memory_space<vmem>>, vector<8x1xf32>
    %c0_139 = arith.constant 0 : index
    %c32 = arith.constant 32 : index
    %169 = vector.load %arg23[%c0_139, %c32] : memref<8x290xf32, #tpu.memory_space<vmem>>, vector<8x256xf32>
    %170 = vector.broadcast %168 : vector<8x1xf32> to vector<8x256xf32>
    %171 = arith.mulf %170, %169 : vector<8x256xf32>
    %172 = arith.addf %167, %171 : vector<8x256xf32>
    %173 = vector.broadcast %158 : vector<1x256xf32> to vector<8x256xf32>
    %174 = arith.mulf %173, %172 : vector<8x256xf32>
    %175 = arith.addf %157, %174 : vector<8x256xf32>
    %c1_140 = arith.constant 1 : index
    %c0_141 = arith.constant 0 : index
    %176 = vector.load %arg19[%c1_140, %c0_141] : memref<2x256xf32, #tpu.memory_space<vmem>>, vector<1x256xf32>
    %c0_142 = arith.constant 0 : index
    %c2_143 = arith.constant 2 : index
    %177 = vector.load %arg13[%c0_142, %c2_143] : memref<8x9xf32, #tpu.memory_space<vmem>>, vector<8x1xf32>
    %c0_144 = arith.constant 0 : index
    %c2_145 = arith.constant 2 : index
    %178 = vector.load %arg23[%c0_144, %c2_145] : memref<8x290xf32, #tpu.memory_space<vmem>>, vector<8x256xf32>
    %179 = vector.broadcast %177 : vector<8x1xf32> to vector<8x256xf32>
    %180 = arith.mulf %179, %178 : vector<8x256xf32>
    %c0_146 = arith.constant 0 : index
    %c5_147 = arith.constant 5 : index
    %181 = vector.load %arg13[%c0_146, %c5_147] : memref<8x9xf32, #tpu.memory_space<vmem>>, vector<8x1xf32>
    %c0_148 = arith.constant 0 : index
    %c18_149 = arith.constant 18 : index
    %182 = vector.load %arg23[%c0_148, %c18_149] : memref<8x290xf32, #tpu.memory_space<vmem>>, vector<8x256xf32>
    %183 = vector.broadcast %181 : vector<8x1xf32> to vector<8x256xf32>
    %184 = arith.mulf %183, %182 : vector<8x256xf32>
    %185 = arith.addf %180, %184 : vector<8x256xf32>
    %c0_150 = arith.constant 0 : index
    %c8_151 = arith.constant 8 : index
    %186 = vector.load %arg13[%c0_150, %c8_151] : memref<8x9xf32, #tpu.memory_space<vmem>>, vector<8x1xf32>
    %c0_152 = arith.constant 0 : index
    %c34 = arith.constant 34 : index
    %187 = vector.load %arg23[%c0_152, %c34] : memref<8x290xf32, #tpu.memory_space<vmem>>, vector<8x256xf32>
    %188 = vector.broadcast %186 : vector<8x1xf32> to vector<8x256xf32>
    %189 = arith.mulf %188, %187 : vector<8x256xf32>
    %190 = arith.addf %185, %189 : vector<8x256xf32>
    %191 = vector.broadcast %176 : vector<1x256xf32> to vector<8x256xf32>
    %192 = arith.mulf %191, %190 : vector<8x256xf32>
    %193 = arith.addf %175, %192 : vector<8x256xf32>
    %c0_153 = arith.constant 0 : index
    %c0_154 = arith.constant 0 : index
    %194 = vector.load %arg18[%c0_153, %c0_154] : memref<8x8xbf16, #tpu.memory_space<vmem>>, vector<8x8xbf16>
    %195 = arith.truncf %83 : vector<8x16xf32> to vector<8x16xbf16>
    %cst_155 = arith.constant dense<0.000000e+00> : vector<8x16xf32>
    %196 = tpu.matmul %194, %195, %cst_155 {dimension_numbers = #tpu.dot_dimension_numbers<[1], [0], [0], [1], [0, 0, 1, 1], [], []>} : vector<8x8xbf16>, vector<8x16xbf16>, vector<8x16xf32> -> vector<8x16xf32>
    %c0_156 = arith.constant 0 : index
    %c0_157 = arith.constant 0 : index
    %197 = vector.load %arg16[%c0_156, %c0_157] : memref<8x8xbf16, #tpu.memory_space<vmem>>, vector<8x8xbf16>
    %198 = arith.truncf %138 : vector<8x64xf32> to vector<8x64xbf16>
    %cst_158 = arith.constant dense<0.000000e+00> : vector<8x64xf32>
    %199 = tpu.matmul %197, %198, %cst_158 {dimension_numbers = #tpu.dot_dimension_numbers<[1], [0], [0], [1], [0, 0, 1, 1], [], []>} : vector<8x8xbf16>, vector<8x64xbf16>, vector<8x64xf32> -> vector<8x64xf32>
    %c0_159 = arith.constant 0 : index
    %c0_160 = arith.constant 0 : index
    %200 = vector.load %arg14[%c0_159, %c0_160] : memref<8x8xbf16, #tpu.memory_space<vmem>>, vector<8x8xbf16>
    %201 = arith.truncf %193 : vector<8x256xf32> to vector<8x256xbf16>
    %cst_161 = arith.constant dense<0.000000e+00> : vector<8x256xf32>
    %202 = tpu.matmul %200, %201, %cst_161 {dimension_numbers = #tpu.dot_dimension_numbers<[1], [0], [0], [1], [0, 0, 1, 1], [], []>} : vector<8x8xbf16>, vector<8x256xbf16>, vector<8x256xf32> -> vector<8x256xf32>
    %c0_162 = arith.constant 0 : index
    %c0_163 = arith.constant 0 : index
    %203 = vector.load %arg11[%c0_162, %c0_163] : memref<64x256xbf16, #tpu.memory_space<vmem>>, vector<64x256xbf16>
    %204 = arith.truncf %199 : vector<8x64xf32> to vector<8x64xbf16>
    %cst_164 = arith.constant dense<0.000000e+00> : vector<8x256xf32>
    %205 = tpu.matmul %204, %203, %cst_164 {dimension_numbers = #tpu.dot_dimension_numbers<[1], [0], [0], [1], [0, 0, 1, 1], [], []>} : vector<8x64xbf16>, vector<64x256xbf16>, vector<8x256xf32> -> vector<8x256xf32>
    %206 = arith.addf %202, %205 : vector<8x256xf32>
    %c0_165 = arith.constant 0 : index
    %c0_166 = arith.constant 0 : index
    %207 = vector.load %arg12[%c0_165, %c0_166] : memref<16x256xbf16, #tpu.memory_space<vmem>>, vector<16x256xbf16>
    %208 = arith.truncf %196 : vector<8x16xf32> to vector<8x16xbf16>
    %cst_167 = arith.constant dense<0.000000e+00> : vector<8x256xf32>
    %209 = tpu.matmul %208, %207, %cst_167 {dimension_numbers = #tpu.dot_dimension_numbers<[1], [0], [0], [1], [0, 0, 1, 1], [], []>} : vector<8x16xbf16>, vector<16x256xbf16>, vector<8x256xf32> -> vector<8x256xf32>
    %210 = arith.addf %206, %209 : vector<8x256xf32>
    %c0_168 = arith.constant 0 : index
    %c0_169 = arith.constant 0 : index
    %c0_170 = arith.constant 0 : index
    %211 = vector.load %arg22[%c0_168, %c0_169, %c0_170] : memref<1x8x256xf32, #tpu.memory_space<vmem>>, vector<1x8x256xf32>
    %212 = vector.shape_cast %211 : vector<1x8x256xf32> to vector<8x256xf32>
    %213 = vector.shape_cast %210 : vector<8x256xf32> to vector<1x8x256xf32>
    tpu.vector_store %arg22[%c0_168, %c0_169, %c0_170], %213 {strides = array<i32>} : memref<1x8x256xf32, #tpu.memory_space<vmem>>, vector<1x8x256xf32>,
    return
  }
  func.func @transform_0(%arg0: i32) -> (i32, i32, i32) {
    %c0_i32 = arith.constant 0 : i32
    %c0_i32_0 = arith.constant 0 : i32
    %c0_i32_1 = arith.constant 0 : i32
    return %arg0, %c0_i32, %c0_i32_0 : i32, i32, i32
  }
  func.func @transform_1(%arg0: i32) -> (i32, i32, i32) {
    %c0_i32 = arith.constant 0 : i32
    %c0_i32_0 = arith.constant 0 : i32
    %c0_i32_1 = arith.constant 0 : i32
    return %arg0, %c0_i32, %c0_i32_0 : i32, i32, i32
  }
  func.func @transform_2(%arg0: i32) -> (i32, i32, i32) {
    %c0_i32 = arith.constant 0 : i32
    %c0_i32_0 = arith.constant 0 : i32
    %c0_i32_1 = arith.constant 0 : i32
    return %arg0, %c0_i32, %c0_i32_0 : i32, i32, i32
  }
  func.func @transform_3(%arg0: i32) -> (i32, i32) {
    %c0_i32 = arith.constant 0 : i32
    %c0_i32_0 = arith.constant 0 : i32
    %c0_i32_1 = arith.constant 0 : i32
    return %c0_i32, %c0_i32_0 : i32, i32
  }
  func.func @transform_4(%arg0: i32) -> (i32, i32) {
    %c0_i32 = arith.constant 0 : i32
    %c0_i32_0 = arith.constant 0 : i32
    %c0_i32_1 = arith.constant 0 : i32
    return %c0_i32, %c0_i32_0 : i32, i32
  }
  func.func @transform_5(%arg0: i32) -> (i32, i32) {
    %c0_i32 = arith.constant 0 : i32
    %c0_i32_0 = arith.constant 0 : i32
    %c0_i32_1 = arith.constant 0 : i32
    return %c0_i32, %c0_i32_0 : i32, i32
  }
  func.func @transform_6(%arg0: i32) -> (i32, i32) {
    %c0_i32 = arith.constant 0 : i32
    %c0_i32_0 = arith.constant 0 : i32
    %c0_i32_1 = arith.constant 0 : i32
    return %c0_i32, %c0_i32_0 : i32, i32
  }
  func.func @transform_7(%arg0: i32) -> (i32, i32) {
    %c0_i32 = arith.constant 0 : i32
    %c0_i32_0 = arith.constant 0 : i32
    %c0_i32_1 = arith.constant 0 : i32
    return %c0_i32, %c0_i32_0 : i32, i32
  }
  func.func @transform_8(%arg0: i32) -> (i32, i32) {
    %c0_i32 = arith.constant 0 : i32
    %c0_i32_0 = arith.constant 0 : i32
    %c0_i32_1 = arith.constant 0 : i32
    return %c0_i32, %c0_i32_0 : i32, i32
  }
  func.func @transform_9(%arg0: i32) -> (i32, i32) {
    %c0_i32 = arith.constant 0 : i32
    %c0_i32_0 = arith.constant 0 : i32
    %c0_i32_1 = arith.constant 0 : i32
    return %c0_i32, %c0_i32_0 : i32, i32
  }
  func.func @transform_10(%arg0: i32) -> (i32, i32) {
    %c0_i32 = arith.constant 0 : i32
    %c0_i32_0 = arith.constant 0 : i32
    %c0_i32_1 = arith.constant 0 : i32
    return %c0_i32, %c0_i32_0 : i32, i32
  }
  func.func @transform_11(%arg0: i32) -> (i32, i32) {
    %c0_i32 = arith.constant 0 : i32
    %c0_i32_0 = arith.constant 0 : i32
    %c0_i32_1 = arith.constant 0 : i32
    return %c0_i32, %c0_i32_0 : i32, i32
  }
  func.func @transform_12(%arg0: i32) -> (i32, i32) {
    %c0_i32 = arith.constant 0 : i32
    %c0_i32_0 = arith.constant 0 : i32
    %c0_i32_1 = arith.constant 0 : i32
    return %c0_i32, %c0_i32_0 : i32, i32
  }
  func.func @transform_13(%arg0: i32) -> (i32, i32) {
    %c0_i32 = arith.constant 0 : i32
    %c0_i32_0 = arith.constant 0 : i32
    %c0_i32_1 = arith.constant 0 : i32
    return %c0_i32, %c0_i32_0 : i32, i32
  }
  func.func @transform_14(%arg0: i32) -> (i32, i32) {
    %c0_i32 = arith.constant 0 : i32
    %c0_i32_0 = arith.constant 0 : i32
    %c0_i32_1 = arith.constant 0 : i32
    return %c0_i32, %c0_i32_0 : i32, i32
  }
  func.func @transform_15(%arg0: i32) -> (i32, i32) {
    %c0_i32 = arith.constant 0 : i32
    %c0_i32_0 = arith.constant 0 : i32
    %c0_i32_1 = arith.constant 0 : i32
    return %c0_i32, %c0_i32_0 : i32, i32
  }
  func.func @transform_16(%arg0: i32) -> (i32, i32) {
    %c0_i32 = arith.constant 0 : i32
    %c0_i32_0 = arith.constant 0 : i32
    %c0_i32_1 = arith.constant 0 : i32
    return %c0_i32, %c0_i32_0 : i32, i32
  }
  func.func @transform_17(%arg0: i32) -> (i32, i32) {
    %c0_i32 = arith.constant 0 : i32
    %c0_i32_0 = arith.constant 0 : i32
    %c0_i32_1 = arith.constant 0 : i32
    return %c0_i32, %c0_i32_0 : i32, i32
  }
  func.func @transform_18(%arg0: i32) -> (i32, i32) {
    %c0_i32 = arith.constant 0 : i32
    %c0_i32_0 = arith.constant 0 : i32
    %c0_i32_1 = arith.constant 0 : i32
    return %c0_i32, %c0_i32_0 : i32, i32
  }
  func.func @transform_19(%arg0: i32) -> (i32, i32) {
    %c0_i32 = arith.constant 0 : i32
    %c0_i32_0 = arith.constant 0 : i32
    %c0_i32_1 = arith.constant 0 : i32
    return %c0_i32, %c0_i32_0 : i32, i32
  }
  func.func @transform_20(%arg0: i32) -> (i32, i32) {
    %c0_i32 = arith.constant 0 : i32
    %c0_i32_0 = arith.constant 0 : i32
    %c0_i32_1 = arith.constant 0 : i32
    return %c0_i32, %c0_i32_0 : i32, i32
  }
  func.func @transform_21(%arg0: i32) -> (i32, i32, i32) {
    %c0_i32 = arith.constant 0 : i32
    %c0_i32_0 = arith.constant 0 : i32
    %c0_i32_1 = arith.constant 0 : i32
    return %arg0, %c0_i32, %c0_i32_0 : i32, i32, i32
  }
}

</mosaic_0001>

<llo_original>
// kernel: fpn_forward.1
$region0: #{fpn_forward.1}
  #allocation0 [shape = 'u32[]', space=smem, size = 0x4, offset = 0x4, fixed_abs, tag = 'smem constant byte address 0x4 - core index']
  #allocation1 [shape = 'u32[144,128]{1,0:T(1,128)}', space=vmem, size = 0x12000, scoped, tag = 'internal scratch']
  #allocation2 [shape = 'f32[8,290]{1,0:T(8,128)}', space=vmem, size = 0x3000, scoped, tag = 'scratch operand']
  #allocation3 [shape = 'f32[8,82]{1,0:T(8,128)}', space=vmem, size = 0x1000, scoped, tag = 'scratch operand']
  #allocation4 [shape = 'f32[8,26]{1,0:T(8,128)}', space=vmem, size = 0x1000, scoped, tag = 'scratch operand']
  %s0 = inlined_call_operand.vmem [shape: bf16[2,4,256], index: 0, kind: input, shape index: {}]
  %s1 = inlined_call_operand.vmem [shape: bf16[2,6,64], index: 1, kind: input, shape index: {}]
  %s2 = inlined_call_operand.vmem [shape: bf16[2,8,16], index: 2, kind: input, shape index: {}]
  %s3 = inlined_call_operand.vmem [shape: bf16[8,8], index: 3, kind: input, shape index: {}]
  %s4 = inlined_call_operand.vmem [shape: f32[8,1], index: 4, kind: input, shape index: {}]
  %s5 = inlined_call_operand.vmem [shape: bf16[8,4], index: 5, kind: input, shape index: {}]
  %s6 = inlined_call_operand.vmem [shape: f32[8,1], index: 6, kind: input, shape index: {}]
  %s7 = inlined_call_operand.vmem [shape: bf16[8,6], index: 7, kind: input, shape index: {}]
  %s8 = inlined_call_operand.vmem [shape: f32[8,1], index: 8, kind: input, shape index: {}]
  %s9 = inlined_call_operand.vmem [shape: bf16[16,64], index: 9, kind: input, shape index: {}]
  %s10 = inlined_call_operand.vmem [shape: bf16[64,256], index: 10, kind: input, shape index: {}]
  %s11 = inlined_call_operand.vmem [shape: bf16[16,256], index: 11, kind: input, shape index: {}]
  %s12 = inlined_call_operand.vmem [shape: f32[8,9], index: 12, kind: input, shape index: {}]
  %s13 = inlined_call_operand.vmem [shape: bf16[8,8], index: 13, kind: input, shape index: {}]
  %s14 = inlined_call_operand.vmem [shape: f32[8,9], index: 14, kind: input, shape index: {}]
  %s15 = inlined_call_operand.vmem [shape: bf16[8,8], index: 15, kind: input, shape index: {}]
  %s16 = inlined_call_operand.vmem [shape: f32[8,9], index: 16, kind: input, shape index: {}]
  %s17 = inlined_call_operand.vmem [shape: bf16[8,8], index: 17, kind: input, shape index: {}]
  %s18 = inlined_call_operand.vmem [shape: f32[2,256], index: 18, kind: input, shape index: {}]
  %s19 = inlined_call_operand.vmem [shape: f32[2,64], index: 19, kind: input, shape index: {}]
  %s20 = inlined_call_operand.vmem [shape: f32[2,16], index: 20, kind: input, shape index: {}]
  %s21 = inlined_call_operand.vmem [shape: f32[2,8,256], index: 21, kind: output, shape index: {}]
  %s22 = sld [smem:[#allocation0]]
  $region117: #{fpn_forward.1} parent=0
    _
  %s24 = ssub.s32 1, %s22
  %s25 = scalar_select 0, %s24, %s22
  loop: start=0, step=1, limit=4
  $region2: #{fpn_forward.1} parent=0 // loop_pre_header
    _
  $region3: #{fpn_forward.1} parent=0 // loop_header
    %s27 = sphi 0, %s31
    %p28 = scmp.ge.s32.totalorder %s27, 4
    %s37 = sphi 0, %s39
    %s40 = sphi 0, %s37
    %s41 = sphi 0, %s40
    %s57 = sphi 0, %s41
    %s63 = sphi 0, %s65
    %s66 = sphi 0, %s63
    %s67 = sphi 0, %s66
    %s83 = sphi 0, %s67
    %s89 = sphi 0, %s91
    %s92 = sphi 0, %s89
    %s93 = sphi 0, %s92
    %s109 = sphi 0, %s93
    %s113 = sphi 0, %s113
    %s115 = sphi 0, %s113
    %s116 = sphi 0, %s115
    %s130 = sphi 0, %s116
    %s134 = sphi 0, %s134
    %s136 = sphi 0, %s134
    %s137 = sphi 0, %s136
    %s151 = sphi 0, %s137
    %s155 = sphi 0, %s155
    %s157 = sphi 0, %s155
    %s158 = sphi 0, %s157
    %s172 = sphi 0, %s158
    %s176 = sphi 0, %s176
    %s178 = sphi 0, %s176
    %s179 = sphi 0, %s178
    %s193 = sphi 0, %s179
    %s197 = sphi 0, %s197
    %s199 = sphi 0, %s197
    %s200 = sphi 0, %s199
    %s214 = sphi 0, %s200
    %s218 = sphi 0, %s218
    %s220 = sphi 0, %s218
    %s221 = sphi 0, %s220
    %s235 = sphi 0, %s221
    %s239 = sphi 0, %s239
    %s241 = sphi 0, %s239
    %s242 = sphi 0, %s241
    %s256 = sphi 0, %s242
    %s260 = sphi 0, %s260
    %s262 = sphi 0, %s260
    %s263 = sphi 0, %s262
    %s277 = sphi 0, %s263
    %s281 = sphi 0, %s281
    %s283 = sphi 0, %s281
    %s284 = sphi 0, %s283
    %s298 = sphi 0, %s284
    %s302 = sphi 0, %s302
    %s304 = sphi 0, %s302
    %s305 = sphi 0, %s304
    %s319 = sphi 0, %s305
    %s323 = sphi 0, %s323
    %s325 = sphi 0, %s323
    %s326 = sphi 0, %s325
    %s340 = sphi 0, %s326
    %s344 = sphi 0, %s344
    %s346 = sphi 0, %s344
    %s347 = sphi 0, %s346
    %s361 = sphi 0, %s347
    %s365 = sphi 0, %s365
    %s367 = sphi 0, %s365
    %s368 = sphi 0, %s367
    %s382 = sphi 0, %s368
    %s386 = sphi 0, %s386
    %s388 = sphi 0, %s386
    %s389 = sphi 0, %s388
    %s403 = sphi 0, %s389
    %s407 = sphi 0, %s407
    %s409 = sphi 0, %s407
    %s410 = sphi 0, %s409
    %s424 = sphi 0, %s410
    %s428 = sphi 0, %s428
    %s430 = sphi 0, %s428
    %s431 = sphi 0, %s430
    %s445 = sphi 0, %s431
    %s449 = sphi 0, %s449
    %s451 = sphi 0, %s449
    %s452 = sphi 0, %s451
    %s466 = sphi 0, %s452
    %s470 = sphi 0, %s470
    %s472 = sphi 0, %s470
    %s473 = sphi 0, %s472
    %s487 = sphi 0, %s473
    %s493 = sphi 0, %s495
    %s496 = sphi 0, %s493
    %s497 = sphi 0, %s496
    %s513 = sphi 0, %s497
  $region4: #{fpn_forward.1} parent=0 // loop_header_branch
    %30 = sbr.rel (%p28) target = $region8
  $region5: #{fpn_forward.1} parent=0 // loop_body
    %s32 = ssub.s32 %s27, 1
    %s33 = ssub.s32 %s27, 2
    %s34 = sadd.s32 %s27, 1
    %s35 = ssub.s32 %s27, %s34
    %p36 = scmp.eq.s32.totalorder %s35, 0
    %s38 = sadd.s32 %s37, 1
    %s39 = scalar_select %p36, %s37, %s38
    %p42 = pneg %p36
    %p43 = scmp.eq.s32.totalorder %s27, 1
    %p44 = por %p42, %p43
    %p45 = scmp.ne.s32.totalorder %s37, %s40
    %p46 = scmp.eq.s32.totalorder %s27, 0
    %p47 = por %p45, %p46
    %p48 = scmp.ne.s32.totalorder %s37, %s40
    %p49 = scmp.eq.s32.totalorder %s32, 1
    %p50 = por %p48, %p49
    %p51 = scmp.ne.s32.totalorder %s40, %s41
    %p52 = scmp.eq.s32.totalorder %s32, 0
    %p53 = por %p51, %p52
    %p54 = scmp.ne.s32.totalorder %s40, %s41
    %p55 = scmp.eq.s32.totalorder %s33, 1
    %p56 = por %p54, %p55
    %p58 = scmp.ne.s32.totalorder %s41, %s57
    %p59 = scmp.eq.s32.totalorder %s33, 0
    %p60 = por %p58, %p59
    %s61 = ssub.s32 %s27, %s34
    %p62 = scmp.eq.s32.totalorder %s61, 0
    %s64 = sadd.s32 %s63, 1
    %s65 = scalar_select %p62, %s63, %s64
    %p68 = pneg %p62
    %p69 = scmp.eq.s32.totalorder %s27, 1
    %p70 = por %p68, %p69
    %p71 = scmp.ne.s32.totalorder %s63, %s66
    %p72 = scmp.eq.s32.totalorder %s27, 0
    %p73 = por %p71, %p72
    %p74 = scmp.ne.s32.totalorder %s63, %s66
    %p75 = scmp.eq.s32.totalorder %s32, 1
    %p76 = por %p74, %p75
    %p77 = scmp.ne.s32.totalorder %s66, %s67
    %p78 = scmp.eq.s32.totalorder %s32, 0
    %p79 = por %p77, %p78
    %p80 = scmp.ne.s32.totalorder %s66, %s67
    %p81 = scmp.eq.s32.totalorder %s33, 1
    %p82 = por %p80, %p81
    %p84 = scmp.ne.s32.totalorder %s67, %s83
    %p85 = scmp.eq.s32.totalorder %s33, 0
    %p86 = por %p84, %p85
    %s87 = ssub.s32 %s27, %s34
    %p88 = scmp.eq.s32.totalorder %s87, 0
    %s90 = sadd.s32 %s89, 1
    %s91 = scalar_select %p88, %s89, %s90
    %p94 = pneg %p88
    %p95 = scmp.eq.s32.totalorder %s27, 1
    %p96 = por %p94, %p95
    %p97 = scmp.ne.s32.totalorder %s89, %s92
    %p98 = scmp.eq.s32.totalorder %s27, 0
    %p99 = por %p97, %p98
    %p100 = scmp.ne.s32.totalorder %s89, %s92
    %p101 = scmp.eq.s32.totalorder %s32, 1
    %p102 = por %p100, %p101
    %p103 = scmp.ne.s32.totalorder %s92, %s93
    %p104 = scmp.eq.s32.totalorder %s32, 0
    %p105 = por %p103, %p104
    %p106 = scmp.ne.s32.totalorder %s92, %s93
    %p107 = scmp.eq.s32.totalorder %s33, 1
    %p108 = por %p106, %p107
    %p110 = scmp.ne.s32.totalorder %s93, %s109
    %p111 = scmp.eq.s32.totalorder %s33, 0
    %p112 = por %p110, %p111
    %s114 = sadd.s32 %s113, 1
    %p117 = scmp.eq.s32.totalorder %s27, 1
    %p118 = scmp.ne.s32.totalorder %s113, %s115
    %p119 = scmp.eq.s32.totalorder %s27, 0
    %p120 = por %p118, %p119
    %p121 = scmp.ne.s32.totalorder %s113, %s115
    %p122 = scmp.eq.s32.totalorder %s32, 1
    %p123 = por %p121, %p122
    %p124 = scmp.ne.s32.totalorder %s115, %s116
    %p125 = scmp.eq.s32.totalorder %s32, 0
    %p126 = por %p124, %p125
    %p127 = scmp.ne.s32.totalorder %s115, %s116
    %p128 = scmp.eq.s32.totalorder %s33, 1
    %p129 = por %p127, %p128
    %p131 = scmp.ne.s32.totalorder %s116, %s130
    %p132 = scmp.eq.s32.totalorder %s33, 0
    %p133 = por %p131, %p132
    %s135 = sadd.s32 %s134, 1
    %p138 = scmp.eq.s32.totalorder %s27, 1
    %p139 = scmp.ne.s32.totalorder %s134, %s136
    %p140 = scmp.eq.s32.totalorder %s27, 0
    %p141 = por %p139, %p140
    %p142 = scmp.ne.s32.totalorder %s134, %s136
    %p143 = scmp.eq.s32.totalorder %s32, 1
    %p144 = por %p142, %p143
    %p145 = scmp.ne.s32.totalorder %s136, %s137
    %p146 = scmp.eq.s32.totalorder %s32, 0
    %p147 = por %p145, %p146
    %p148 = scmp.ne.s32.totalorder %s136, %s137
    %p149 = scmp.eq.s32.totalorder %s33, 1
    %p150 = por %p148, %p149
    %p152 = scmp.ne.s32.totalorder %s137, %s151
    %p153 = scmp.eq.s32.totalorder %s33, 0
    %p154 = por %p152, %p153
    %s156 = sadd.s32 %s155, 1
    %p159 = scmp.eq.s32.totalorder %s27, 1
    %p160 = scmp.ne.s32.totalorder %s155, %s157
    %p161 = scmp.eq.s32.totalorder %s27, 0
    %p162 = por %p160, %p161
    %p163 = scmp.ne.s32.totalorder %s155, %s157
    %p164 = scmp.eq.s32.totalorder %s32, 1
    %p165 = por %p163, %p164
    %p166 = scmp.ne.s32.totalorder %s157, %s158
    %p167 = scmp.eq.s32.totalorder %s32, 0
    %p168 = por %p166, %p167
    %p169 = scmp.ne.s32.totalorder %s157, %s158
    %p170 = scmp.eq.s32.totalorder %s33, 1
    %p171 = por %p169, %p170
    %p173 = scmp.ne.s32.totalorder %s158, %s172
    %p174 = scmp.eq.s32.totalorder %s33, 0
    %p175 = por %p173, %p174
    %s177 = sadd.s32 %s176, 1
    %p180 = scmp.eq.s32.totalorder %s27, 1
    %p181 = scmp.ne.s32.totalorder %s176, %s178
    %p182 = scmp.eq.s32.totalorder %s27, 0
    %p183 = por %p181, %p182
    %p184 = scmp.ne.s32.totalorder %s176, %s178
    %p185 = scmp.eq.s32.totalorder %s32, 1
    %p186 = por %p184, %p185
    %p187 = scmp.ne.s32.totalorder %s178, %s179
    %p188 = scmp.eq.s32.totalorder %s32, 0
    %p189 = por %p187, %p188
    %p190 = scmp.ne.s32.totalorder %s178, %s179
    %p191 = scmp.eq.s32.totalorder %s33, 1
    %p192 = por %p190, %p191
    %p194 = scmp.ne.s32.totalorder %s179, %s193
    %p195 = scmp.eq.s32.totalorder %s33, 0
    %p196 = por %p194, %p195
    %s198 = sadd.s32 %s197, 1
    %p201 = scmp.eq.s32.totalorder %s27, 1
    %p202 = scmp.ne.s32.totalorder %s197, %s199
    %p203 = scmp.eq.s32.totalorder %s27, 0
    %p204 = por %p202, %p203
    %p205 = scmp.ne.s32.totalorder %s197, %s199
    %p206 = scmp.eq.s32.totalorder %s32, 1
    %p207 = por %p205, %p206
    %p208 = scmp.ne.s32.totalorder %s199, %s200
    %p209 = scmp.eq.s32.totalorder %s32, 0
    %p210 = por %p208, %p209
    %p211 = scmp.ne.s32.totalorder %s199, %s200
    %p212 = scmp.eq.s32.totalorder %s33, 1
    %p213 = por %p211, %p212
    %p215 = scmp.ne.s32.totalorder %s200, %s214
    %p216 = scmp.eq.s32.totalorder %s33, 0
    %p217 = por %p215, %p216
    %s219 = sadd.s32 %s218, 1
    %p222 = scmp.eq.s32.totalorder %s27, 1
    %p223 = scmp.ne.s32.totalorder %s218, %s220
    %p224 = scmp.eq.s32.totalorder %s27, 0
    %p225 = por %p223, %p224
    %p226 = scmp.ne.s32.totalorder %s218, %s220
    %p227 = scmp.eq.s32.totalorder %s32, 1
    %p228 = por %p226, %p227
    %p229 = scmp.ne.s32.totalorder %s220, %s221
    %p230 = scmp.eq.s32.totalorder %s32, 0
    %p231 = por %p229, %p230
    %p232 = scmp.ne.s32.totalorder %s220, %s221
    %p233 = scmp.eq.s32.totalorder %s33, 1
    %p234 = por %p232, %p233
    %p236 = scmp.ne.s32.totalorder %s221, %s235
    %p237 = scmp.eq.s32.totalorder %s33, 0
    %p238 = por %p236, %p237
    %s240 = sadd.s32 %s239, 1
    %p243 = scmp.eq.s32.totalorder %s27, 1
    %p244 = scmp.ne.s32.totalorder %s239, %s241
    %p245 = scmp.eq.s32.totalorder %s27, 0
    %p246 = por %p244, %p245
    %p247 = scmp.ne.s32.totalorder %s239, %s241
    %p248 = scmp.eq.s32.totalorder %s32, 1
    %p249 = por %p247, %p248
    %p250 = scmp.ne.s32.totalorder %s241, %s242
    %p251 = scmp.eq.s32.totalorder %s32, 0
    %p252 = por %p250, %p251
    %p253 = scmp.ne.s32.totalorder %s241, %s242
    %p254 = scmp.eq.s32.totalorder %s33, 1
    %p255 = por %p253, %p254
    %p257 = scmp.ne.s32.totalorder %s242, %s256
    %p258 = scmp.eq.s32.totalorder %s33, 0
    %p259 = por %p257, %p258
    %s261 = sadd.s32 %s260, 1
    %p264 = scmp.eq.s32.totalorder %s27, 1
    %p265 = scmp.ne.s32.totalorder %s260, %s262
    %p266 = scmp.eq.s32.totalorder %s27, 0
    %p267 = por %p265, %p266
    %p268 = scmp.ne.s32.totalorder %s260, %s262
    %p269 = scmp.eq.s32.totalorder %s32, 1
    %p270 = por %p268, %p269
    %p271 = scmp.ne.s32.totalorder %s262, %s263
    %p272 = scmp.eq.s32.totalorder %s32, 0
    %p273 = por %p271, %p272
    %p274 = scmp.ne.s32.totalorder %s262, %s263
    %p275 = scmp.eq.s32.totalorder %s33, 1
    %p276 = por %p274, %p275
    %p278 = scmp.ne.s32.totalorder %s263, %s277
    %p279 = scmp.eq.s32.totalorder %s33, 0
    %p280 = por %p278, %p279
    %s282 = sadd.s32 %s281, 1
    %p285 = scmp.eq.s32.totalorder %s27, 1
    %p286 = scmp.ne.s32.totalorder %s281, %s283
    %p287 = scmp.eq.s32.totalorder %s27, 0
    %p288 = por %p286, %p287
    %p289 = scmp.ne.s32.totalorder %s281, %s283
    %p290 = scmp.eq.s32.totalorder %s32, 1
    %p291 = por %p289, %p290
    %p292 = scmp.ne.s32.totalorder %s283, %s284
    %p293 = scmp.eq.s32.totalorder %s32, 0
    %p294 = por %p292, %p293
    %p295 = scmp.ne.s32.totalorder %s283, %s284
    %p296 = scmp.eq.s32.totalorder %s33, 1
    %p297 = por %p295, %p296
    %p299 = scmp.ne.s32.totalorder %s284, %s298
    %p300 = scmp.eq.s32.totalorder %s33, 0
    %p301 = por %p299, %p300
    %s303 = sadd.s32 %s302, 1
    %p306 = scmp.eq.s32.totalorder %s27, 1
    %p307 = scmp.ne.s32.totalorder %s302, %s304
    %p308 = scmp.eq.s32.totalorder %s27, 0
    %p309 = por %p307, %p308
    %p310 = scmp.ne.s32.totalorder %s302, %s304
    %p311 = scmp.eq.s32.totalorder %s32, 1
    %p312 = por %p310, %p311
    %p313 = scmp.ne.s32.totalorder %s304, %s305
    %p314 = scmp.eq.s32.totalorder %s32, 0
    %p315 = por %p313, %p314
    %p316 = scmp.ne.s32.totalorder %s304, %s305
    %p317 = scmp.eq.s32.totalorder %s33, 1
    %p318 = por %p316, %p317
    %p320 = scmp.ne.s32.totalorder %s305, %s319
    %p321 = scmp.eq.s32.totalorder %s33, 0
    %p322 = por %p320, %p321
    %s324 = sadd.s32 %s323, 1
    %p327 = scmp.eq.s32.totalorder %s27, 1
    %p328 = scmp.ne.s32.totalorder %s323, %s325
    %p329 = scmp.eq.s32.totalorder %s27, 0
    %p330 = por %p328, %p329
    %p331 = scmp.ne.s32.totalorder %s323, %s325
    %p332 = scmp.eq.s32.totalorder %s32, 1
    %p333 = por %p331, %p332
    %p334 = scmp.ne.s32.totalorder %s325, %s326
    %p335 = scmp.eq.s32.totalorder %s32, 0
    %p336 = por %p334, %p335
    %p337 = scmp.ne.s32.totalorder %s325, %s326
    %p338 = scmp.eq.s32.totalorder %s33, 1
    %p339 = por %p337, %p338
    %p341 = scmp.ne.s32.totalorder %s326, %s340
    %p342 = scmp.eq.s32.totalorder %s33, 0
    %p343 = por %p341, %p342
    %s345 = sadd.s32 %s344, 1
    %p348 = scmp.eq.s32.totalorder %s27, 1
    %p349 = scmp.ne.s32.totalorder %s344, %s346
    %p350 = scmp.eq.s32.totalorder %s27, 0
    %p351 = por %p349, %p350
    %p352 = scmp.ne.s32.totalorder %s344, %s346
    %p353 = scmp.eq.s32.totalorder %s32, 1
    %p354 = por %p352, %p353
    %p355 = scmp.ne.s32.totalorder %s346, %s347
    %p356 = scmp.eq.s32.totalorder %s32, 0
    %p357 = por %p355, %p356
    %p358 = scmp.ne.s32.totalorder %s346, %s347
    %p359 = scmp.eq.s32.totalorder %s33, 1
    %p360 = por %p358, %p359
    %p362 = scmp.ne.s32.totalorder %s347, %s361
    %p363 = scmp.eq.s32.totalorder %s33, 0
    %p364 = por %p362, %p363
    %s366 = sadd.s32 %s365, 1
    %p369 = scmp.eq.s32.totalorder %s27, 1
    %p370 = scmp.ne.s32.totalorder %s365, %s367
    %p371 = scmp.eq.s32.totalorder %s27, 0
    %p372 = por %p370, %p371
    %p373 = scmp.ne.s32.totalorder %s365, %s367
    %p374 = scmp.eq.s32.totalorder %s32, 1
    %p375 = por %p373, %p374
    %p376 = scmp.ne.s32.totalorder %s367, %s368
    %p377 = scmp.eq.s32.totalorder %s32, 0
    %p378 = por %p376, %p377
    %p379 = scmp.ne.s32.totalorder %s367, %s368
    %p380 = scmp.eq.s32.totalorder %s33, 1
    %p381 = por %p379, %p380
    %p383 = scmp.ne.s32.totalorder %s368, %s382
    %p384 = scmp.eq.s32.totalorder %s33, 0
    %p385 = por %p383, %p384
    %s387 = sadd.s32 %s386, 1
    %p390 = scmp.eq.s32.totalorder %s27, 1
    %p391 = scmp.ne.s32.totalorder %s386, %s388
    %p392 = scmp.eq.s32.totalorder %s27, 0
    %p393 = por %p391, %p392
    %p394 = scmp.ne.s32.totalorder %s386, %s388
    %p395 = scmp.eq.s32.totalorder %s32, 1
    %p396 = por %p394, %p395
    %p397 = scmp.ne.s32.totalorder %s388, %s389
    %p398 = scmp.eq.s32.totalorder %s32, 0
    %p399 = por %p397, %p398
    %p400 = scmp.ne.s32.totalorder %s388, %s389
    %p401 = scmp.eq.s32.totalorder %s33, 1
    %p402 = por %p400, %p401
    %p404 = scmp.ne.s32.totalorder %s389, %s403
    %p405 = scmp.eq.s32.totalorder %s33, 0
    %p406 = por %p404, %p405
    %s408 = sadd.s32 %s407, 1
    %p411 = scmp.eq.s32.totalorder %s27, 1
    %p412 = scmp.ne.s32.totalorder %s407, %s409
    %p413 = scmp.eq.s32.totalorder %s27, 0
    %p414 = por %p412, %p413
    %p415 = scmp.ne.s32.totalorder %s407, %s409
    %p416 = scmp.eq.s32.totalorder %s32, 1
    %p417 = por %p415, %p416
    %p418 = scmp.ne.s32.totalorder %s409, %s410
    %p419 = scmp.eq.s32.totalorder %s32, 0
    %p420 = por %p418, %p419
    %p421 = scmp.ne.s32.totalorder %s409, %s410
    %p422 = scmp.eq.s32.totalorder %s33, 1
    %p423 = por %p421, %p422
    %p425 = scmp.ne.s32.totalorder %s410, %s424
    %p426 = scmp.eq.s32.totalorder %s33, 0
    %p427 = por %p425, %p426
    %s429 = sadd.s32 %s428, 1
    %p432 = scmp.eq.s32.totalorder %s27, 1
    %p433 = scmp.ne.s32.totalorder %s428, %s430
    %p434 = scmp.eq.s32.totalorder %s27, 0
    %p435 = por %p433, %p434
    %p436 = scmp.ne.s32.totalorder %s428, %s430
    %p437 = scmp.eq.s32.totalorder %s32, 1
    %p438 = por %p436, %p437
    %p439 = scmp.ne.s32.totalorder %s430, %s431
    %p440 = scmp.eq.s32.totalorder %s32, 0
    %p441 = por %p439, %p440
    %p442 = scmp.ne.s32.totalorder %s430, %s431
    %p443 = scmp.eq.s32.totalorder %s33, 1
    %p444 = por %p442, %p443
    %p446 = scmp.ne.s32.totalorder %s431, %s445
    %p447 = scmp.eq.s32.totalorder %s33, 0
    %p448 = por %p446, %p447
    %s450 = sadd.s32 %s449, 1
    %p453 = scmp.eq.s32.totalorder %s27, 1
    %p454 = scmp.ne.s32.totalorder %s449, %s451
    %p455 = scmp.eq.s32.totalorder %s27, 0
    %p456 = por %p454, %p455
    %p457 = scmp.ne.s32.totalorder %s449, %s451
    %p458 = scmp.eq.s32.totalorder %s32, 1
    %p459 = por %p457, %p458
    %p460 = scmp.ne.s32.totalorder %s451, %s452
    %p461 = scmp.eq.s32.totalorder %s32, 0
    %p462 = por %p460, %p461
    %p463 = scmp.ne.s32.totalorder %s451, %s452
    %p464 = scmp.eq.s32.totalorder %s33, 1
    %p465 = por %p463, %p464
    %p467 = scmp.ne.s32.totalorder %s452, %s466
    %p468 = scmp.eq.s32.totalorder %s33, 0
    %p469 = por %p467, %p468
    %s471 = sadd.s32 %s470, 1
    %p474 = scmp.eq.s32.totalorder %s27, 1
    %p475 = scmp.ne.s32.totalorder %s470, %s472
    %p476 = scmp.eq.s32.totalorder %s27, 0
    %p477 = por %p475, %p476
    %p478 = scmp.ne.s32.totalorder %s470, %s472
    %p479 = scmp.eq.s32.totalorder %s32, 1
    %p480 = por %p478, %p479
    %p481 = scmp.ne.s32.totalorder %s472, %s473
    %p482 = scmp.eq.s32.totalorder %s32, 0
    %p483 = por %p481, %p482
    %p484 = scmp.ne.s32.totalorder %s472, %s473
    %p485 = scmp.eq.s32.totalorder %s33, 1
    %p486 = por %p484, %p485
    %p488 = scmp.ne.s32.totalorder %s473, %s487
    %p489 = scmp.eq.s32.totalorder %s33, 0
    %p490 = por %p488, %p489
    %s491 = ssub.s32 %s27, %s34
    %p492 = scmp.eq.s32.totalorder %s491, 0
    %s494 = sadd.s32 %s493, 1
    %s495 = scalar_select %p492, %s493, %s494
    %p498 = pneg %p492
    %p499 = scmp.eq.s32.totalorder %s27, 1
    %p500 = por %p498, %p499
    %p501 = scmp.ne.s32.totalorder %s493, %s496
    %p502 = scmp.eq.s32.totalorder %s27, 0
    %p503 = por %p501, %p502
    %p504 = scmp.ne.s32.totalorder %s493, %s496
    %p505 = scmp.eq.s32.totalorder %s32, 1
    %p506 = por %p504, %p505
    %p507 = scmp.ne.s32.totalorder %s496, %s497
    %p508 = scmp.eq.s32.totalorder %s32, 0
    %p509 = por %p507, %p508
    %p510 = scmp.ne.s32.totalorder %s496, %s497
    %p511 = scmp.eq.s32.totalorder %s33, 1
    %p512 = por %p510, %p511
    %p514 = scmp.ne.s32.totalorder %s497, %s513
    %p515 = scmp.eq.s32.totalorder %s33, 0
    %p516 = por %p514, %p515
    %p517 = scmp.le.s32.totalorder 1, %s27
    %p518 = scmp.lt.s32.totalorder %s27, 3
    %p519 = pnand %p517, %p518
    %p520 = pneg %p519
    // Predicated region
    $region9: #{fpn_forward.1} parent=5 // pred_check
      _
    $region10: #{fpn_forward.1} parent=5 // pred_check_branch
      %522 = sbr.rel (%p519) target = $region12
    $region11: #{fpn_forward.1} parent=5 // pred_region
      %s523 = ssub.s32 %s27, 1
      // Predicated region
      $region13: #{fpn_forward.1} parent=11 // pred_check
        %p524 = pneg %p126
      $region14: #{fpn_forward.1} parent=11 // pred_check_branch
        %526 = sbr.rel (%p524) target = $region16
      $region15: #{fpn_forward.1} parent=11 // pred_region
        _
      $region16: #{fpn_forward.1} parent=11 // pred_fallthru
        _
      // Predicated region
      $region17: #{fpn_forward.1} parent=11 // pred_check
        %p527 = pneg %p147
      $region18: #{fpn_forward.1} parent=11 // pred_check_branch
        %529 = sbr.rel (%p527) target = $region20
      $region19: #{fpn_forward.1} parent=11 // pred_region
        _
      $region20: #{fpn_forward.1} parent=11 // pred_fallthru
        _
      // Predicated region
      $region21: #{fpn_forward.1} parent=11 // pred_check
        %p530 = pneg %p168
      $region22: #{fpn_forward.1} parent=11 // pred_check_branch
        %532 = sbr.rel (%p530) target = $region24
      $region23: #{fpn_forward.1} parent=11 // pred_region
        _
      $region24: #{fpn_forward.1} parent=11 // pred_fallthru
        _
      // Predicated region
      $region25: #{fpn_forward.1} parent=11 // pred_check
        %p533 = pneg %p189
      $region26: #{fpn_forward.1} parent=11 // pred_check_branch
        %535 = sbr.rel (%p533) target = $region28
      $region27: #{fpn_forward.1} parent=11 // pred_region
        _
      $region28: #{fpn_forward.1} parent=11 // pred_fallthru
        _
      // Predicated region
      $region29: #{fpn_forward.1} parent=11 // pred_check
        %p536 = pneg %p210
      $region30: #{fpn_forward.1} parent=11 // pred_check_branch
        %538 = sbr.rel (%p536) target = $region32
      $region31: #{fpn_forward.1} parent=11 // pred_region
        _
      $region32: #{fpn_forward.1} parent=11 // pred_fallthru
        _
      // Predicated region
      $region33: #{fpn_forward.1} parent=11 // pred_check
        %p539 = pneg %p231
      $region34: #{fpn_forward.1} parent=11 // pred_check_branch
        %541 = sbr.rel (%p539) target = $region36
      $region35: #{fpn_forward.1} parent=11 // pred_region
        _
      $region36: #{fpn_forward.1} parent=11 // pred_fallthru
        _
      // Predicated region
      $region37: #{fpn_forward.1} parent=11 // pred_check
        %p542 = pneg %p252
      $region38: #{fpn_forward.1} parent=11 // pred_check_branch
        %544 = sbr.rel (%p542) target = $region40
      $region39: #{fpn_forward.1} parent=11 // pred_region
        _
      $region40: #{fpn_forward.1} parent=11 // pred_fallthru
        _
      // Predicated region
      $region41: #{fpn_forward.1} parent=11 // pred_check
        %p545 = pneg %p273
      $region42: #{fpn_forward.1} parent=11 // pred_check_branch
        %547 = sbr.rel (%p545) target = $region44
      $region43: #{fpn_forward.1} parent=11 // pred_region
        _
      $region44: #{fpn_forward.1} parent=11 // pred_fallthru
        _
      // Predicated region
      $region45: #{fpn_forward.1} parent=11 // pred_check
        %p548 = pneg %p294
      $region46: #{fpn_forward.1} parent=11 // pred_check_branch
        %550 = sbr.rel (%p548) target = $region48
      $region47: #{fpn_forward.1} parent=11 // pred_region
        _
      $region48: #{fpn_forward.1} parent=11 // pred_fallthru
        _
      // Predicated region
      $region49: #{fpn_forward.1} parent=11 // pred_check
        %p551 = pneg %p315
      $region50: #{fpn_forward.1} parent=11 // pred_check_branch
        %553 = sbr.rel (%p551) target = $region52
      $region51: #{fpn_forward.1} parent=11 // pred_region
        _
      $region52: #{fpn_forward.1} parent=11 // pred_fallthru
        _
      // Predicated region
      $region53: #{fpn_forward.1} parent=11 // pred_check
        %p554 = pneg %p336
      $region54: #{fpn_forward.1} parent=11 // pred_check_branch
        %556 = sbr.rel (%p554) target = $region56
      $region55: #{fpn_forward.1} parent=11 // pred_region
        _
      $region56: #{fpn_forward.1} parent=11 // pred_fallthru
        _
      // Predicated region
      $region57: #{fpn_forward.1} parent=11 // pred_check
        %p557 = pneg %p357
      $region58: #{fpn_forward.1} parent=11 // pred_check_branch
        %559 = sbr.rel (%p557) target = $region60
      $region59: #{fpn_forward.1} parent=11 // pred_region
        _
      $region60: #{fpn_forward.1} parent=11 // pred_fallthru
        _
      // Predicated region
      $region61: #{fpn_forward.1} parent=11 // pred_check
        %p560 = pneg %p378
      $region62: #{fpn_forward.1} parent=11 // pred_check_branch
        %562 = sbr.rel (%p560) target = $region64
      $region63: #{fpn_forward.1} parent=11 // pred_region
        _
      $region64: #{fpn_forward.1} parent=11 // pred_fallthru
        _
      // Predicated region
      $region65: #{fpn_forward.1} parent=11 // pred_check
        %p563 = pneg %p399
      $region66: #{fpn_forward.1} parent=11 // pred_check_branch
        %565 = sbr.rel (%p563) target = $region68
      $region67: #{fpn_forward.1} parent=11 // pred_region
        _
      $region68: #{fpn_forward.1} parent=11 // pred_fallthru
        _
      // Predicated region
      $region69: #{fpn_forward.1} parent=11 // pred_check
        %p566 = pneg %p420
      $region70: #{fpn_forward.1} parent=11 // pred_check_branch
        %568 = sbr.rel (%p566) target = $region72
      $region71: #{fpn_forward.1} parent=11 // pred_region
        _
      $region72: #{fpn_forward.1} parent=11 // pred_fallthru
        _
      // Predicated region
      $region73: #{fpn_forward.1} parent=11 // pred_check
        %p569 = pneg %p441
      $region74: #{fpn_forward.1} parent=11 // pred_check_branch
        %571 = sbr.rel (%p569) target = $region76
      $region75: #{fpn_forward.1} parent=11 // pred_region
        _
      $region76: #{fpn_forward.1} parent=11 // pred_fallthru
        _
      // Predicated region
      $region77: #{fpn_forward.1} parent=11 // pred_check
        %p572 = pneg %p462
      $region78: #{fpn_forward.1} parent=11 // pred_check_branch
        %574 = sbr.rel (%p572) target = $region80
      $region79: #{fpn_forward.1} parent=11 // pred_region
        _
      $region80: #{fpn_forward.1} parent=11 // pred_fallthru
        _
      // Predicated region
      $region81: #{fpn_forward.1} parent=11 // pred_check
        %p575 = pneg %p483
      $region82: #{fpn_forward.1} parent=11 // pred_check_branch
        %577 = sbr.rel (%p575) target = $region84
      $region83: #{fpn_forward.1} parent=11 // pred_region
        _
      $region84: #{fpn_forward.1} parent=11 // pred_fallthru
        _
    $region12: #{fpn_forward.1} parent=5 // pred_fallthru
      _
    %p578 = scmp.lt.s32.totalorder %s27, 2
    // Predicated region
    $region85: #{fpn_forward.1} parent=5 // pred_check
      %p579 = pneg %p578
    $region86: #{fpn_forward.1} parent=5 // pred_check_branch
      %581 = sbr.rel (%p579) target = $region88
    $region87: #{fpn_forward.1} parent=5 // pred_region
      // Predicated region
      $region89: #{fpn_forward.1} parent=87 // pred_check
        %p582 = pneg %p47
      $region90: #{fpn_forward.1} parent=87 // pred_check_branch
        %584 = sbr.rel (%p582) target = $region92
      $region91: #{fpn_forward.1} parent=87 // pred_region
        %p585 = scmp.lt.s32.totalorder %s27, 1
        %s586 = scalar_select %p585, %s27, 1
        %s587 = smul.addr %s586, 2
        %s588 = smul.addr %s587, 2
        %s589 = scalar_lea.vmem %s0, %s588
      $region92: #{fpn_forward.1} parent=87 // pred_fallthru
        _
      // Predicated region
      $region93: #{fpn_forward.1} parent=87 // pred_check
        %p590 = pneg %p73
      $region94: #{fpn_forward.1} parent=87 // pred_check_branch
        %592 = sbr.rel (%p590) target = $region96
      $region95: #{fpn_forward.1} parent=87 // pred_region
        %p593 = scmp.lt.s32.totalorder %s27, 1
        %s594 = scalar_select %p593, %s27, 1
        %s595 = smul.addr %s594, 4
        %s596 = scalar_lea.vmem %s1, %s595
      $region96: #{fpn_forward.1} parent=87 // pred_fallthru
        _
      // Predicated region
      $region97: #{fpn_forward.1} parent=87 // pred_check
        %p597 = pneg %p99
      $region98: #{fpn_forward.1} parent=87 // pred_check_branch
        %599 = sbr.rel (%p597) target = $region100
      $region99: #{fpn_forward.1} parent=87 // pred_region
        %p600 = scmp.lt.s32.totalorder %s27, 1
        %s601 = scalar_select %p600, %s27, 1
        %s602 = smul.addr %s601, 4
        %s603 = scalar_lea.vmem %s2, %s602
      $region100: #{fpn_forward.1} parent=87 // pred_fallthru
        _
    $region88: #{fpn_forward.1} parent=5 // pred_fallthru
      _
    %p604 = scmp.le.s32.totalorder 1, %s27
    %p605 = scmp.lt.s32.totalorder %s27, 3
    %p606 = pnand %p604, %p605
    %p607 = pneg %p606
    // Predicated region
    $region101: #{fpn_forward.1} parent=5 // pred_check
      _
    $region102: #{fpn_forward.1} parent=5 // pred_check_branch
      %609 = sbr.rel (%p606) target = $region104
    $region103: #{fpn_forward.1} parent=5 // pred_region
      %s610 = ssub.s32 %s27, 1
      %p611 = scmp.lt.s32.totalorder %s32, 1
      %s612 = scalar_select %p611, %s32, 1
      %s613 = smul.addr %s612, 2
      %s614 = smul.addr %s613, 2
      %s615 = scalar_lea.vmem %s0, %s614
      %p616 = pneg %p53
      %p617 = pneg %p50
      %p618 = scmp.lt.s32.totalorder %s32, 1
      %s619 = scalar_select %p618, %s32, 1
      %s620 = smul.addr %s619, 4
      %s621 = scalar_lea.vmem %s1, %s620
      %p622 = pneg %p79
      %p623 = pneg %p76
      %p624 = scmp.lt.s32.totalorder %s32, 1
      %s625 = scalar_select %p624, %s32, 1
      %s626 = smul.addr %s625, 4
      %s627 = scalar_lea.vmem %s2, %s626
      %p628 = pneg %p105
      %p629 = pneg %p102
      %p630 = pneg %p126
      %p631 = pneg %p123
      %p632 = pneg %p147
      %p633 = pneg %p144
      %p634 = pneg %p168
      %p635 = pneg %p165
      %p636 = pneg %p189
      %p637 = pneg %p186
      %p638 = pneg %p210
      %p639 = pneg %p207
      %p640 = pneg %p231
      %p641 = pneg %p228
      %p642 = pneg %p252
      %p643 = pneg %p249
      %p644 = pneg %p273
      %p645 = pneg %p270
      %p646 = pneg %p294
      %p647 = pneg %p291
      %p648 = pneg %p315
      %p649 = pneg %p312
      %p650 = pneg %p336
      %p651 = pneg %p333
      %p652 = pneg %p357
      %p653 = pneg %p354
      %p654 = pneg %p378
      %p655 = pneg %p375
      %p656 = pneg %p399
      %p657 = pneg %p396
      %p658 = pneg %p420
      %p659 = pneg %p417
      %p660 = pneg %p441
      %p661 = pneg %p438
      %p662 = pneg %p462
      %p663 = pneg %p459
      %p664 = pneg %p483
      %p665 = pneg %p480
      %p666 = pneg %p509
      %p667 = pneg %p506
      %p668 = scmp.lt.s32.totalorder %s32, 1
      %s669 = scalar_select %p668, %s32, 1
      %s670 = smul.addr %s669, 2
      %s671 = smul.addr %s670, 8
      %s672 = scalar_lea.vmem %s21, %s671
      %p673 = scmp.lt.s32.totalorder %s32, 1
      %s674 = scalar_select %p673, %s32, 1
      %s675 = smul.addr %s674, 2
      %s676 = smul.addr %s675, 2
      %s677 = scalar_lea.vmem %s0, %s676
      %p678 = scmp.lt.s32.totalorder %s32, 1
      %s679 = scalar_select %p678, %s32, 1
      %s680 = smul.addr %s679, 4
      %s681 = scalar_lea.vmem %s1, %s680
      %p682 = scmp.lt.s32.totalorder %s32, 1
      %s683 = scalar_select %p682, %s32, 1
      %s684 = smul.addr %s683, 4
      %s685 = scalar_lea.vmem %s2, %s684
      %p686 = scmp.lt.s32.totalorder %s32, 1
      %s687 = scalar_select %p686, %s32, 1
      %s688 = smul.addr %s687, 2
      %s689 = smul.addr %s688, 8
      %s690 = scalar_lea.vmem %s21, %s689
      %v692 = vld [vmem:[%s3] sm:$0xf]
      %v693 = vld [vmem:[%s685] sm:$0xf]
      %v694 = vld [vmem:[%s4] sm:$0xff]
      %696 = vset.pattern.permute.xlu0 0
      %697 = vperm.xlu0 %696, %v694
      %v698 = vpop.permute.xlu0 %697
      %vm700 = vcmask 64512
      %v702 = vsel %vm700, %v692, 0
      %vm704 = vcmask 1043456
      %v706 = vsel %vm704, %v693, 0
      %708 = vmatprep.subr.bf16.mxu0 0
      %709 = vmatpush1.bf16.msra.mxu0 %v706
      %710 = vmatprep.subr.bf16.mxu0 0
      %711 = vmatpush1.bf16.msra.mxu0 0
      %712 = vmatprep.subr.bf16.mxu0 0
      %713 = vmatpush1.bf16.msra.mxu0 0
      %714 = vmatprep.subr.bf16.mxu0 0
      %715 = vmatpush1.bf16.msra.mxu0 0
      %716 = vmatprep.subr.bf16.mxu0 0
      %717 = vmatpush1.bf16.msra.mxu0 0
      %718 = vmatprep.subr.bf16.mxu0 0
      %719 = vmatpush1.bf16.msra.mxu0 0
      %720 = vmatprep.subr.bf16.mxu0 0
      %721 = vmatpush1.bf16.msra.mxu0 0
      %722 = vmatprep.subr.bf16.mxu0 0
      %723 = vmatpush1.bf16.msra.mxu0 0
      %724 = vmatprep.subr.bf16.mxu0 0
      %725 = vmatpush1.bf16.msra.mxu0 0
      %726 = vmatprep.subr.bf16.mxu0 0
      %727 = vmatpush1.bf16.msra.mxu0 0
      %728 = vmatprep.subr.bf16.mxu0 0
      %729 = vmatpush1.bf16.msra.mxu0 0
      %730 = vmatprep.subr.bf16.mxu0 0
      %731 = vmatpush1.bf16.msra.mxu0 0
      %732 = vmatprep.subr.bf16.mxu0 0
      %733 = vmatpush1.bf16.msra.mxu0 0
      %734 = vmatprep.subr.bf16.mxu0 0
      %735 = vmatpush1.bf16.msra.mxu0 0
      %736 = vmatprep.subr.bf16.mxu0 0
      %737 = vmatpush1.bf16.msra.mxu0 0
      %738 = vmatprep.subr.bf16.mxu0 0
      %739 = vmatpush1.bf16.msra.mxu0 0
      %740 = vmatprep.mubr.bf16.mxu0 0
      %741 = vmatmul.mubr.bf16.gmra.mrb[0].mxu0 %v702
      %v742 = vpop.f32.mrb[0].mxu0
      %v743 = vadd.f32 %v698, %v742
      %v744 = vpop.f32.mrb[0].mxu0
      %v745 = vpop.f32.mrb[0].mxu0
      %v746 = vpop.f32.mrb[0].mxu0
      %747 = vdwg.mxu0
      %v748 = vld [vmem:[%s7] sm:$0xf]
      %v749 = vld [vmem:[%s681] sm:$0x7]
      %v750 = vld [vmem:[%s8] sm:$0xff]
      %752 = vset.pattern.permute.xlu0 0
      %753 = vperm.xlu0 %752, %v750
      %v754 = vpop.permute.xlu0 %753
      %vm756 = vcmask 48128
      %v758 = vsel %vm756, %v748, 0
      %vm760 = vcmask 1042432
      %v762 = vsel %vm760, %v749, 0
      %764 = vmatprep.subr.bf16.mxu0 0
      %765 = vmatpush1.bf16.msra.mxu0 %v762
      %766 = vmatprep.subr.bf16.mxu0 0
      %767 = vmatpush1.bf16.msra.mxu0 0
      %768 = vmatprep.subr.bf16.mxu0 0
      %769 = vmatpush1.bf16.msra.mxu0 0
      %770 = vmatprep.subr.bf16.mxu0 0
      %771 = vmatpush1.bf16.msra.mxu0 0
      %772 = vmatprep.subr.bf16.mxu0 0
      %773 = vmatpush1.bf16.msra.mxu0 0
      %774 = vmatprep.subr.bf16.mxu0 0
      %775 = vmatpush1.bf16.msra.mxu0 0
      %776 = vmatprep.subr.bf16.mxu0 0
      %777 = vmatpush1.bf16.msra.mxu0 0
      %778 = vmatprep.subr.bf16.mxu0 0
      %779 = vmatpush1.bf16.msra.mxu0 0
      %780 = vmatprep.subr.bf16.mxu0 0
      %781 = vmatpush1.bf16.msra.mxu0 0
      %782 = vmatprep.subr.bf16.mxu0 0
      %783 = vmatpush1.bf16.msra.mxu0 0
      %784 = vmatprep.subr.bf16.mxu0 0
      %785 = vmatpush1.bf16.msra.mxu0 0
      %786 = vmatprep.subr.bf16.mxu0 0
      %787 = vmatpush1.bf16.msra.mxu0 0
      %788 = vmatprep.subr.bf16.mxu0 0
      %789 = vmatpush1.bf16.msra.mxu0 0
      %790 = vmatprep.subr.bf16.mxu0 0
      %791 = vmatpush1.bf16.msra.mxu0 0
      %792 = vmatprep.subr.bf16.mxu0 0
      %793 = vmatpush1.bf16.msra.mxu0 0
      %794 = vmatprep.subr.bf16.mxu0 0
      %795 = vmatpush1.bf16.msra.mxu0 0
      %796 = vmatprep.mubr.bf16.mxu0 0
      %797 = vmatmul.mubr.bf16.gmra.mrb[0].mxu0 %v758
      %v798 = vpop.f32.mrb[0].mxu0
      %v799 = vadd.f32 %v754, %v798
      %v800 = vpop.f32.mrb[0].mxu0
      %v801 = vpop.f32.mrb[0].mxu0
      %v802 = vpop.f32.mrb[0].mxu0
      %803 = vdwg.mxu0
      %v804 = vld [vmem:[%s5] sm:$0xf]
      %v805 = vld [vmem:[%s677] sm:$0xf]
      %v806 = vld [vmem:[%s6] sm:$0xff]
      %808 = vset.pattern.permute.xlu0 0
      %809 = vperm.xlu0 %808, %v806
      %v810 = vpop.permute.xlu0 %809
      %v814 = vunpack.c.l.s4 1983009808
      %v815 = vunpack.c.0.s8 %v814
      %v816 = vlaneseq
      %v817 = vshrl.u32 %v816, 7
      %v818 = vsub.s32 %v815, %v817
      %v819 = vrot.slane %v805, %v818
      %v820 = vcombine.high %v819, %v819
      %vm821 = vcmask 31744
      %v823 = vsel %vm821, %v804, 0
      %vm825 = vcmask 1041408
      %v827 = vsel %vm825, %v819, 0
      %v830 = vsel %vm825, %v820, 0
      %832 = vmatprep.subr.bf16.mxu0 %v830
      %833 = vmatpush1.bf16.msra.mxu0 %v827
      %834 = vmatprep.subr.bf16.mxu0 0
      %835 = vmatpush1.bf16.msra.mxu0 0
      %836 = vmatprep.subr.bf16.mxu0 0
      %837 = vmatpush1.bf16.msra.mxu0 0
      %838 = vmatprep.subr.bf16.mxu0 0
      %839 = vmatpush1.bf16.msra.mxu0 0
      %840 = vmatprep.subr.bf16.mxu0 0
      %841 = vmatpush1.bf16.msra.mxu0 0
      %842 = vmatprep.subr.bf16.mxu0 0
      %843 = vmatpush1.bf16.msra.mxu0 0
      %844 = vmatprep.subr.bf16.mxu0 0
      %845 = vmatpush1.bf16.msra.mxu0 0
      %846 = vmatprep.subr.bf16.mxu0 0
      %847 = vmatpush1.bf16.msra.mxu0 0
      %848 = vmatprep.subr.bf16.mxu0 0
      %849 = vmatpush1.bf16.msra.mxu0 0
      %850 = vmatprep.subr.bf16.mxu0 0
      %851 = vmatpush1.bf16.msra.mxu0 0
      %852 = vmatprep.subr.bf16.mxu0 0
      %853 = vmatpush1.bf16.msra.mxu0 0
      %854 = vmatprep.subr.bf16.mxu0 0
      %855 = vmatpush1.bf16.msra.mxu0 0
      %856 = vmatprep.subr.bf16.mxu0 0
      %857 = vmatpush1.bf16.msra.mxu0 0
      %858 = vmatprep.subr.bf16.mxu0 0
      %859 = vmatpush1.bf16.msra.mxu0 0
      %860 = vmatprep.subr.bf16.mxu0 0
      %861 = vmatpush1.bf16.msra.mxu0 0
      %862 = vmatprep.subr.bf16.mxu0 0
      %863 = vmatpush1.bf16.msra.mxu0 0
      %864 = vmatprep.mubr.bf16.mxu0 0
      %865 = vmatmul.mubr.bf16.gmra.mrb[0].mxu0 %v823
      %v866 = vpop.f32.mrb[0].mxu0
      %v867 = vadd.f32 %v810, %v866
      %v868 = vpop.f32.mrb[0].mxu0
      %v869 = vadd.f32 %v810, %v868
      %v870 = vpop.f32.mrb[0].mxu0
      %v871 = vpop.f32.mrb[0].mxu0
      %872 = vdwg.mxu0
      %v873 = vld [vmem:[%s9] sm:$0xf]
      %v874 = vld [vmem:[%s9 + $0x4] sm:$0xf]
      %v875 = vpack.c.bf16 %v743, %v743
      %v878 = vunpack.c.l.b16 %v873
      %v879 = vunpack.c.l.b16 %v874
      %v880 = vpack.c.b16 %v879, %v878
      %vm882 = vcmask 130048
      %v884 = vsel %vm882, %v875, 0
      %886 = vmatprep.subr.bf16.mxu0 0
      %887 = vmatpush1.bf16.msra.mxu0 %v880
      %888 = vmatprep.subr.bf16.mxu0 0
      %889 = vmatpush1.bf16.msra.mxu0 0
      %890 = vmatprep.subr.bf16.mxu0 0
      %891 = vmatpush1.bf16.msra.mxu0 0
      %892 = vmatprep.subr.bf16.mxu0 0
      %893 = vmatpush1.bf16.msra.mxu0 0
      %894 = vmatprep.subr.bf16.mxu0 0
      %895 = vmatpush1.bf16.msra.mxu0 0
      %896 = vmatprep.subr.bf16.mxu0 0
      %897 = vmatpush1.bf16.msra.mxu0 0
      %898 = vmatprep.subr.bf16.mxu0 0
      %899 = vmatpush1.bf16.msra.mxu0 0
      %900 = vmatprep.subr.bf16.mxu0 0
      %901 = vmatpush1.bf16.msra.mxu0 0
      %902 = vmatprep.subr.bf16.mxu0 0
      %903 = vmatpush1.bf16.msra.mxu0 0
      %904 = vmatprep.subr.bf16.mxu0 0
      %905 = vmatpush1.bf16.msra.mxu0 0
      %906 = vmatprep.subr.bf16.mxu0 0
      %907 = vmatpush1.bf16.msra.mxu0 0
      %908 = vmatprep.subr.bf16.mxu0 0
      %909 = vmatpush1.bf16.msra.mxu0 0
      %910 = vmatprep.subr.bf16.mxu0 0
      %911 = vmatpush1.bf16.msra.mxu0 0
      %912 = vmatprep.subr.bf16.mxu0 0
      %913 = vmatpush1.bf16.msra.mxu0 0
      %914 = vmatprep.subr.bf16.mxu0 0
      %915 = vmatpush1.bf16.msra.mxu0 0
      %916 = vmatprep.subr.bf16.mxu0 0
      %917 = vmatpush1.bf16.msra.mxu0 0
      %918 = vmatprep.mubr.bf16.mxu0 0
      %919 = vmatmul.mubr.bf16.gmra.mrb[0].mxu0 %v884
      %v920 = vpop.f32.mrb[0].mxu0
      %v921 = vadd.f32 %v799, %v920
      %v922 = vpop.f32.mrb[0].mxu0
      %v923 = vpop.f32.mrb[0].mxu0
      %v924 = vpop.f32.mrb[0].mxu0
      %925 = vdwg.mxu0
      %v926 = vld [vmem:[%s10] sm:$0xff]
      %v927 = vld [vmem:[%s10 + $0x8] sm:$0xff]
      %v928 = vld [vmem:[%s10 + $0x10] sm:$0xff]
      %v929 = vld [vmem:[%s10 + $0x18] sm:$0xff]
      %v930 = vld [vmem:[%s10 + $0x20] sm:$0xff]
      %v931 = vld [vmem:[%s10 + $0x28] sm:$0xff]
      %v932 = vld [vmem:[%s10 + $0x30] sm:$0xff]
      %v933 = vld [vmem:[%s10 + $0x38] sm:$0xff]
      %v934 = vpack.c.bf16 %v921, %v921
      %v943 = vunpack.c.l.b16 %v926
      %v944 = vunpack.c.h.b16 %v926
      %v945 = vunpack.c.l.b16 %v927
      %v946 = vunpack.c.h.b16 %v927
      %v947 = vunpack.c.l.b16 %v928
      %v948 = vunpack.c.h.b16 %v928
      %v949 = vunpack.c.l.b16 %v929
      %v950 = vunpack.c.h.b16 %v929
      %v951 = vunpack.c.l.b16 %v930
      %v952 = vunpack.c.h.b16 %v930
      %v953 = vunpack.c.l.b16 %v931
      %v954 = vunpack.c.h.b16 %v931
      %v955 = vunpack.c.l.b16 %v932
      %v956 = vunpack.c.h.b16 %v932
      %v957 = vunpack.c.l.b16 %v933
      %v958 = vunpack.c.h.b16 %v933
      %v959 = vpack.c.b16 %v945, %v943
      %v960 = vpack.c.b16 %v946, %v944
      %v961 = vpack.c.b16 %v949, %v947
      %v962 = vpack.c.b16 %v950, %v948
      %v963 = vpack.c.b16 %v953, %v951
      %v964 = vpack.c.b16 %v954, %v952
      %v965 = vpack.c.b16 %v957, %v955
      %v966 = vpack.c.b16 %v958, %v956
      %vm975 = vcmask 523264
      %v977 = vsel %vm975, %v934, 0
      %979 = vmatprep.subr.bf16.mxu0 %v960
      %980 = vmatpush1.bf16.msra.mxu0 %v959
      %981 = vmatprep.subr.bf16.mxu0 %v962
      %982 = vmatpush1.bf16.msra.mxu0 %v961
      %983 = vmatprep.subr.bf16.mxu0 %v964
      %984 = vmatpush1.bf16.msra.mxu0 %v963
      %985 = vmatprep.subr.bf16.mxu0 %v966
      %986 = vmatpush1.bf16.msra.mxu0 %v965
      %987 = vmatprep.subr.bf16.mxu0 0
      %988 = vmatpush1.bf16.msra.mxu0 0
      %989 = vmatprep.subr.bf16.mxu0 0
      %990 = vmatpush1.bf16.msra.mxu0 0
      %991 = vmatprep.subr.bf16.mxu0 0
      %992 = vmatpush1.bf16.msra.mxu0 0
      %993 = vmatprep.subr.bf16.mxu0 0
      %994 = vmatpush1.bf16.msra.mxu0 0
      %995 = vmatprep.subr.bf16.mxu0 0
      %996 = vmatpush1.bf16.msra.mxu0 0
      %997 = vmatprep.subr.bf16.mxu0 0
      %998 = vmatpush1.bf16.msra.mxu0 0
      %999 = vmatprep.subr.bf16.mxu0 0
      %1000 = vmatpush1.bf16.msra.mxu0 0
      %1001 = vmatprep.subr.bf16.mxu0 0
      %1002 = vmatpush1.bf16.msra.mxu0 0
      %1003 = vmatprep.subr.bf16.mxu0 0
      %1004 = vmatpush1.bf16.msra.mxu0 0
      %1005 = vmatprep.subr.bf16.mxu0 0
      %1006 = vmatpush1.bf16.msra.mxu0 0
      %1007 = vmatprep.subr.bf16.mxu0 0
      %1008 = vmatpush1.bf16.msra.mxu0 0
      %1009 = vmatprep.subr.bf16.mxu0 0
      %1010 = vmatpush1.bf16.msra.mxu0 0
      %1011 = vmatprep.mubr.bf16.mxu0 0
      %1012 = vmatmul.mubr.bf16.gmra.mrb[0].mxu0 %v977
      %v1013 = vpop.f32.mrb[0].mxu0
      %v1014 = vadd.f32 %v867, %v1013
      %v1015 = vpop.f32.mrb[0].mxu0
      %v1016 = vadd.f32 %v869, %v1015
      %v1017 = vpop.f32.mrb[0].mxu0
      %v1018 = vpop.f32.mrb[0].mxu0
      %1019 = vdwg.mxu0
      %vm1020 = vcmask 39936
      %1021 = vst.msk [vmem:[#allocation4] sm:$0xff] %vm1020, 0.0
      %vm1022 = vcmask 212136
      %1023 = vst.msk [vmem:[#allocation4] sm:$0xff] %vm1022, 0.0
      %1025 = vrot.lane.b32.xlu0 %v743, 5
      %v1026 = vpop.permute.xlu0 %1025
      %vm1028 = vcmask 171048
      %1029 = vst.msk [vmem:[#allocation4] sm:$0xff] %vm1028, %v1026
      %v1030 = vld [vmem:[%s16] sm:$0xff]
      %v1031 = vld [vmem:[#allocation4] sm:$0xff]
      %1033 = vset.pattern.permute.xlu0 1
      %1034 = vperm.xlu0 %1033, %v1030
      %v1035 = vpop.permute.xlu0 %1034
      %v1037 = vmul.f32 %v1035, %v1031
      %1038 = vset.pattern.permute.xlu0 4
      %1039 = vperm.xlu0 %1038, %v1030
      %v1040 = vpop.permute.xlu0 %1039
      %v1042 = vmul.f32 %v1040, %v1031
      %1044 = vrot.lane.b32.xlu0 %v1042, 124
      %v1045 = vpop.permute.xlu0 %1044
      %v1047 = vadd.f32 %v1037, %v1045
      %1048 = vset.pattern.permute.xlu0 7
      %1049 = vperm.xlu0 %1048, %v1030
      %v1050 = vpop.permute.xlu0 %1049
      %v1052 = vmul.f32 %v1050, %v1031
      %1054 = vrot.lane.b32.xlu0 %v1052, 120
      %v1055 = vpop.permute.xlu0 %1054
      %v1057 = vadd.f32 %v1047, %v1055
      %v1058 = vld [vmem:[%s20] sm:$0x1]
      %1059 = vset.pattern.permute.xlu0 0
      %1060 = vperm.xlu0 %1059, %v1030
      %v1061 = vpop.permute.xlu0 %1060
      %v1063 = vmul.f32 %v1061, %v1031
      %1064 = vset.pattern.permute.xlu0 3
      %1065 = vperm.xlu0 %1064, %v1030
      %v1066 = vpop.permute.xlu0 %1065
      %v1068 = vmul.f32 %v1066, %v1031
      %1070 = vrot.lane.b32.xlu0 %v1068, 124
      %v1071 = vpop.permute.xlu0 %1070
      %v1073 = vadd.f32 %v1063, %v1071
      %1074 = vset.pattern.permute.xlu0 6
      %1075 = vperm.xlu0 %1074, %v1030
      %v1076 = vpop.permute.xlu0 %1075
      %v1078 = vmul.f32 %v1076, %v1031
      %1080 = vrot.lane.b32.xlu0 %v1078, 120
      %v1081 = vpop.permute.xlu0 %1080
      %v1083 = vadd.f32 %v1073, %v1081
      %v1084 = vlaneseq
      %v1085 = vshrl.u32 %v1084, 7
      %v1086 = vsub.s32 0, %v1085
      %v1087 = vrot.slane %v1058, %v1086
      %v1088 = vmul.f32 %v1087, %v1083
      %1090 = vrot.lane.b32.xlu0 %v1088, 1
      %v1091 = vpop.permute.xlu0 %1090
      %v1093 = vadd.f32 %v1057, %v1091
      %v1094 = vld [vmem:[%s20 + $0x1] sm:$0x1]
      %1095 = vset.pattern.permute.xlu0 2
      %1096 = vperm.xlu0 %1095, %v1030
      %v1097 = vpop.permute.xlu0 %1096
      %v1099 = vmul.f32 %v1097, %v1031
      %1100 = vset.pattern.permute.xlu0 5
      %1101 = vperm.xlu0 %1100, %v1030
      %v1102 = vpop.permute.xlu0 %1101
      %v1104 = vmul.f32 %v1102, %v1031
      %1106 = vrot.lane.b32.xlu0 %v1104, 124
      %v1107 = vpop.permute.xlu0 %1106
      %v1109 = vadd.f32 %v1099, %v1107
      %1110 = vset.pattern.permute.xlu0 8
      %1111 = vperm.xlu0 %1110, %v1030
      %v1112 = vpop.permute.xlu0 %1111
      %v1114 = vmul.f32 %v1112, %v1031
      %1116 = vrot.lane.b32.xlu0 %v1114, 120
      %v1117 = vpop.permute.xlu0 %1116
      %v1119 = vadd.f32 %v1109, %v1117
      %v1120 = vlaneseq
      %v1121 = vshrl.u32 %v1120, 7
      %v1122 = vsub.s32 0, %v1121
      %v1123 = vrot.slane %v1094, %v1122
      %1125 = vrot.lane.b32.xlu0 %v1119, 126
      %v1126 = vpop.permute.xlu0 %1125
      %v1128 = vmul.f32 %v1123, %v1126
      %1130 = vrot.lane.b32.xlu0 %v1128, 1
      %v1131 = vpop.permute.xlu0 %1130
      %v1133 = vadd.f32 %v1093, %v1131
      %vm1134 = vcmask 72704
      %1135 = vst.msk [vmem:[#allocation3] sm:$0xff] %vm1134, 0.0
      %vm1136 = vcmask 671304
      %1137 = vst.msk [vmem:[#allocation3] sm:$0xff] %vm1136, 0.0
      %1139 = vrot.lane.b32.xlu0 %v921, 9
      %v1140 = vpop.permute.xlu0 %1139
      %vm1142 = vcmask 597064
      %1143 = vst.msk [vmem:[#allocation3] sm:$0xff] %vm1142, %v1140
      %v1144 = vld [vmem:[%s14] sm:$0xff]
      %v1145 = vld [vmem:[#allocation3] sm:$0xff]
      %1147 = vset.pattern.permute.xlu0 1
      %1148 = vperm.xlu0 %1147, %v1144
      %v1149 = vpop.permute.xlu0 %1148
      %v1151 = vmul.f32 %v1149, %v1145
      %1152 = vset.pattern.permute.xlu0 4
      %1153 = vperm.xlu0 %1152, %v1144
      %v1154 = vpop.permute.xlu0 %1153
      %v1156 = vmul.f32 %v1154, %v1145
      %1158 = vrot.lane.b32.xlu0 %v1156, 120
      %v1159 = vpop.permute.xlu0 %1158
      %v1161 = vadd.f32 %v1151, %v1159
      %1162 = vset.pattern.permute.xlu0 7
      %1163 = vperm.xlu0 %1162, %v1144
      %v1164 = vpop.permute.xlu0 %1163
      %v1166 = vmul.f32 %v1164, %v1145
      %1168 = vrot.lane.b32.xlu0 %v1166, 112
      %v1169 = vpop.permute.xlu0 %1168
      %v1171 = vadd.f32 %v1161, %v1169
      %v1172 = vld [vmem:[%s19] sm:$0x1]
      %1173 = vset.pattern.permute.xlu0 0
      %1174 = vperm.xlu0 %1173, %v1144
      %v1175 = vpop.permute.xlu0 %1174
      %v1177 = vmul.f32 %v1175, %v1145
      %1178 = vset.pattern.permute.xlu0 3
      %1179 = vperm.xlu0 %1178, %v1144
      %v1180 = vpop.permute.xlu0 %1179
      %v1182 = vmul.f32 %v1180, %v1145
      %1184 = vrot.lane.b32.xlu0 %v1182, 120
      %v1185 = vpop.permute.xlu0 %1184
      %v1187 = vadd.f32 %v1177, %v1185
      %1188 = vset.pattern.permute.xlu0 6
      %1189 = vperm.xlu0 %1188, %v1144
      %v1190 = vpop.permute.xlu0 %1189
      %v1192 = vmul.f32 %v1190, %v1145
      %1194 = vrot.lane.b32.xlu0 %v1192, 112
      %v1195 = vpop.permute.xlu0 %1194
      %v1197 = vadd.f32 %v1187, %v1195
      %v1198 = vlaneseq
      %v1199 = vshrl.u32 %v1198, 7
      %v1200 = vsub.s32 0, %v1199
      %v1201 = vrot.slane %v1172, %v1200
      %v1202 = vmul.f32 %v1201, %v1197
      %1204 = vrot.lane.b32.xlu0 %v1202, 1
      %v1205 = vpop.permute.xlu0 %1204
      %v1207 = vadd.f32 %v1171, %v1205
      %v1208 = vld [vmem:[%s19 + $0x1] sm:$0x1]
      %1209 = vset.pattern.permute.xlu0 2
      %1210 = vperm.xlu0 %1209, %v1144
      %v1211 = vpop.permute.xlu0 %1210
      %v1213 = vmul.f32 %v1211, %v1145
      %1214 = vset.pattern.permute.xlu0 5
      %1215 = vperm.xlu0 %1214, %v1144
      %v1216 = vpop.permute.xlu0 %1215
      %v1218 = vmul.f32 %v1216, %v1145
      %1220 = vrot.lane.b32.xlu0 %v1218, 120
      %v1221 = vpop.permute.xlu0 %1220
      %v1223 = vadd.f32 %v1213, %v1221
      %1224 = vset.pattern.permute.xlu0 8
      %1225 = vperm.xlu0 %1224, %v1144
      %v1226 = vpop.permute.xlu0 %1225
      %v1228 = vmul.f32 %v1226, %v1145
      %1230 = vrot.lane.b32.xlu0 %v1228, 112
      %v1231 = vpop.permute.xlu0 %1230
      %v1233 = vadd.f32 %v1223, %v1231
      %v1234 = vlaneseq
      %v1235 = vshrl.u32 %v1234, 7
      %v1236 = vsub.s32 0, %v1235
      %v1237 = vrot.slane %v1208, %v1236
      %1239 = vrot.lane.b32.xlu0 %v1233, 126
      %v1240 = vpop.permute.xlu0 %1239
      %v1242 = vmul.f32 %v1237, %v1240
      %1244 = vrot.lane.b32.xlu0 %v1242, 1
      %v1245 = vpop.permute.xlu0 %1244
      %v1247 = vadd.f32 %v1207, %v1245
      %vm1248 = vcmask 138240
      %1249 = vst.msk [vmem:[#allocation2] sm:$0xff] %vm1248, 0.0
      %vm1250 = vcmask 277640
      %1251 = vst.msk [vmem:[#allocation2 + $0x10] sm:$0xff] %vm1250, 0.0
      %1254 = vrot.lane.b32.xlu0 %v1014, 17
      %v1255 = vpop.permute.xlu0 %1254
      %1256 = vrot.lane.b32.xlu0 %v1016, 17
      %v1257 = vpop.permute.xlu0 %1256
      %v1258 = vsel %vm1248, %v1255, %v1257
      %vm1262 = vcmask 1047688
      %1263 = vst.msk [vmem:[#allocation2] sm:$0xff] %vm1262, %v1255
      %1264 = vst [vmem:[#allocation2 + $0x8] sm:$0xff] %v1258
      %1265 = vst.msk [vmem:[#allocation2 + $0x10] sm:$0xff] %vm1248, %v1257
      %v1266 = vld [vmem:[%s12] sm:$0xff]
      %v1267 = vld [vmem:[#allocation2] sm:$0xff]
      %v1268 = vld [vmem:[#allocation2 + $0x8] sm:$0xff]
      %v1269 = vld [vmem:[#allocation2 + $0x10] sm:$0xff]
      %1271 = vset.pattern.permute.xlu0 1
      %1272 = vperm.xlu0 %1271, %v1266
      %v1273 = vpop.permute.xlu0 %1272
      %v1275 = vmul.f32 %v1273, %v1267
      %v1276 = vmul.f32 %v1273, %v1268
      %v1277 = vmul.f32 %v1273, %v1269
      %1278 = vset.pattern.permute.xlu0 4
      %1279 = vperm.xlu0 %1278, %v1266
      %v1280 = vpop.permute.xlu0 %1279
      %v1282 = vmul.f32 %v1280, %v1267
      %v1283 = vmul.f32 %v1280, %v1268
      %v1284 = vmul.f32 %v1280, %v1269
      %1288 = vrot.lane.b32.xlu0 %v1282, 112
      %v1289 = vpop.permute.xlu0 %1288
      %1290 = vrot.lane.b32.xlu0 %v1283, 112
      %v1291 = vpop.permute.xlu0 %1290
      %1292 = vrot.lane.b32.xlu0 %v1284, 112
      %v1293 = vpop.permute.xlu0 %1292
      %vm1294 = vcmask 916480
      %v1295 = vsel %vm1294, %v1289, %v1291
      %v1296 = vsel %vm1294, %v1291, %v1293
      %v1300 = vadd.f32 %v1275, %v1295
      %v1301 = vadd.f32 %v1276, %v1296
      %v1302 = vadd.f32 %v1277, %v1293
      %1303 = vset.pattern.permute.xlu0 7
      %1304 = vperm.xlu0 %1303, %v1266
      %v1305 = vpop.permute.xlu0 %1304
      %v1307 = vmul.f32 %v1305, %v1267
      %v1308 = vmul.f32 %v1305, %v1268
      %v1309 = vmul.f32 %v1305, %v1269
      %1313 = vrot.lane.b32.xlu0 %v1307, 96
      %v1314 = vpop.permute.xlu0 %1313
      %1315 = vrot.lane.b32.xlu0 %v1308, 96
      %v1316 = vpop.permute.xlu0 %1315
      %1317 = vrot.lane.b32.xlu0 %v1309, 96
      %v1318 = vpop.permute.xlu0 %1317
      %vm1319 = vcmask 785408
      %v1320 = vsel %vm1319, %v1314, %v1316
      %v1321 = vsel %vm1319, %v1316, %v1318
      %v1325 = vadd.f32 %v1300, %v1320
      %v1326 = vadd.f32 %v1301, %v1321
      %v1327 = vadd.f32 %v1302, %v1318
      %v1328 = vld [vmem:[%s18] ss:$2 sm:$0x3]
      %v1329 = vld [vmem:[#allocation2] sm:$0xff]
      %v1330 = vld [vmem:[#allocation2 + $0x8] sm:$0xff]
      %1331 = vset.pattern.permute.xlu0 0
      %1332 = vperm.xlu0 %1331, %v1266
      %v1333 = vpop.permute.xlu0 %1332
      %v1335 = vmul.f32 %v1333, %v1329
      %v1336 = vmul.f32 %v1333, %v1330
      %1337 = vset.pattern.permute.xlu0 3
      %1338 = vperm.xlu0 %1337, %v1266
      %v1339 = vpop.permute.xlu0 %1338
      %v1341 = vmul.f32 %v1339, %v1267
      %v1342 = vmul.f32 %v1339, %v1268
      %v1343 = vmul.f32 %v1339, %v1269
      %1347 = vrot.lane.b32.xlu0 %v1341, 112
      %v1348 = vpop.permute.xlu0 %1347
      %1349 = vrot.lane.b32.xlu0 %v1342, 112
      %v1350 = vpop.permute.xlu0 %1349
      %1351 = vrot.lane.b32.xlu0 %v1343, 112
      %v1352 = vpop.permute.xlu0 %1351
      %v1353 = vsel %vm1294, %v1348, %v1350
      %v1354 = vsel %vm1294, %v1350, %v1352
      %v1357 = vadd.f32 %v1335, %v1353
      %v1358 = vadd.f32 %v1336, %v1354
      %1359 = vset.pattern.permute.xlu0 6
      %1360 = vperm.xlu0 %1359, %v1266
      %v1361 = vpop.permute.xlu0 %1360
      %v1363 = vmul.f32 %v1361, %v1267
      %v1364 = vmul.f32 %v1361, %v1268
      %v1365 = vmul.f32 %v1361, %v1269
      %1369 = vrot.lane.b32.xlu0 %v1363, 96
      %v1370 = vpop.permute.xlu0 %1369
      %1371 = vrot.lane.b32.xlu0 %v1364, 96
      %v1372 = vpop.permute.xlu0 %1371
      %1373 = vrot.lane.b32.xlu0 %v1365, 96
      %v1374 = vpop.permute.xlu0 %1373
      %v1375 = vsel %vm1319, %v1370, %v1372
      %v1376 = vsel %vm1319, %v1372, %v1374
      %v1379 = vadd.f32 %v1357, %v1375
      %v1380 = vadd.f32 %v1358, %v1376
      %v1382 = vlaneseq
      %v1383 = vshrl.u32 %v1382, 7
      %v1384 = vsub.s32 0, %v1383
      %v1385 = vrot.slane %v1328, %v1384
      %v1386 = vlaneseq
      %v1387 = vshrl.u32 %v1386, 7
      %v1388 = vsub.s32 1, %v1387
      %v1389 = vrot.slane %v1328, %v1388
      %v1392 = vmul.f32 %v1385, %v1379
      %v1393 = vmul.f32 %v1389, %v1380
      %1396 = vrot.lane.b32.xlu0 %v1392, 1
      %v1397 = vpop.permute.xlu0 %1396
      %1398 = vrot.lane.b32.xlu0 %v1393, 1
      %v1399 = vpop.permute.xlu0 %1398
      %vm1400 = vcmask 7168
      %v1401 = vsel %vm1400, %v1397, %v1399
      %v1405 = vadd.f32 %v1325, %v1397
      %v1406 = vadd.f32 %v1326, %v1401
      %v1407 = vadd.f32 %v1327, %v1399
      %s1408 = scalar_lea.vmem %s18, 1
      %v1409 = vld [vmem:[%s1408] ss:$2 sm:$0x3]
      %1410 = vset.pattern.permute.xlu0 2
      %1411 = vperm.xlu0 %1410, %v1266
      %v1412 = vpop.permute.xlu0 %1411
      %v1414 = vmul.f32 %v1412, %v1267
      %v1415 = vmul.f32 %v1412, %v1268
      %v1416 = vmul.f32 %v1412, %v1269
      %1417 = vset.pattern.permute.xlu0 5
      %1418 = vperm.xlu0 %1417, %v1266
      %v1419 = vpop.permute.xlu0 %1418
      %v1421 = vmul.f32 %v1419, %v1267
      %v1422 = vmul.f32 %v1419, %v1268
      %v1423 = vmul.f32 %v1419, %v1269
      %1427 = vrot.lane.b32.xlu0 %v1421, 112
      %v1428 = vpop.permute.xlu0 %1427
      %1429 = vrot.lane.b32.xlu0 %v1422, 112
      %v1430 = vpop.permute.xlu0 %1429
      %1431 = vrot.lane.b32.xlu0 %v1423, 112
      %v1432 = vpop.permute.xlu0 %1431
      %v1433 = vsel %vm1294, %v1428, %v1430
      %v1434 = vsel %vm1294, %v1430, %v1432
      %v1438 = vadd.f32 %v1414, %v1433
      %v1439 = vadd.f32 %v1415, %v1434
      %v1440 = vadd.f32 %v1416, %v1432
      %1441 = vset.pattern.permute.xlu0 8
      %1442 = vperm.xlu0 %1441, %v1266
      %v1443 = vpop.permute.xlu0 %1442
      %v1445 = vmul.f32 %v1443, %v1267
      %v1446 = vmul.f32 %v1443, %v1268
      %v1447 = vmul.f32 %v1443, %v1269
      %1451 = vrot.lane.b32.xlu0 %v1445, 96
      %v1452 = vpop.permute.xlu0 %1451
      %1453 = vrot.lane.b32.xlu0 %v1446, 96
      %v1454 = vpop.permute.xlu0 %1453
      %1455 = vrot.lane.b32.xlu0 %v1447, 96
      %v1456 = vpop.permute.xlu0 %1455
      %v1457 = vsel %vm1319, %v1452, %v1454
      %v1458 = vsel %vm1319, %v1454, %v1456
      %v1462 = vadd.f32 %v1438, %v1457
      %v1463 = vadd.f32 %v1439, %v1458
      %v1464 = vadd.f32 %v1440, %v1456
      %v1466 = vlaneseq
      %v1467 = vshrl.u32 %v1466, 7
      %v1468 = vsub.s32 0, %v1467
      %v1469 = vrot.slane %v1409, %v1468
      %v1470 = vlaneseq
      %v1471 = vshrl.u32 %v1470, 7
      %v1472 = vsub.s32 1, %v1471
      %v1473 = vrot.slane %v1409, %v1472
      %1479 = vrot.lane.b32.xlu0 %v1462, 126
      %v1480 = vpop.permute.xlu0 %1479
      %1481 = vrot.lane.b32.xlu0 %v1463, 126
      %v1482 = vpop.permute.xlu0 %1481
      %1483 = vrot.lane.b32.xlu0 %v1464, 126
      %v1484 = vpop.permute.xlu0 %1483
      %vm1485 = vcmask 1031168
      %v1486 = vsel %vm1485, %v1480, %v1482
      %v1487 = vsel %vm1485, %v1482, %v1484
      %v1490 = vmul.f32 %v1469, %v1486
      %v1491 = vmul.f32 %v1473, %v1487
      %1494 = vrot.lane.b32.xlu0 %v1490, 1
      %v1495 = vpop.permute.xlu0 %1494
      %1496 = vrot.lane.b32.xlu0 %v1491, 1
      %v1497 = vpop.permute.xlu0 %1496
      %v1498 = vsel %vm1400, %v1495, %v1497
      %v1502 = vadd.f32 %v1405, %v1495
      %v1503 = vadd.f32 %v1406, %v1498
      %v1504 = vadd.f32 %v1407, %v1497
      %v1505 = vld [vmem:[%s17] sm:$0xf]
      %v1506 = vpack.c.bf16 %v1133, %v1133
      %1508 = vrot.lane.b32.xlu0 %v1506, 127
      %v1509 = vpop.permute.xlu0 %1508
      %v1511 = vsel %vm700, %v1505, 0
      %v1514 = vsel %vm704, %v1509, 0
      %1516 = vmatprep.subr.bf16.mxu0 0
      %1517 = vmatpush1.bf16.msra.mxu0 %v1514
      %1518 = vmatprep.subr.bf16.mxu0 0
      %1519 = vmatpush1.bf16.msra.mxu0 0
      %1520 = vmatprep.subr.bf16.mxu0 0
      %1521 = vmatpush1.bf16.msra.mxu0 0
      %1522 = vmatprep.subr.bf16.mxu0 0
      %1523 = vmatpush1.bf16.msra.mxu0 0
      %1524 = vmatprep.subr.bf16.mxu0 0
      %1525 = vmatpush1.bf16.msra.mxu0 0
      %1526 = vmatprep.subr.bf16.mxu0 0
      %1527 = vmatpush1.bf16.msra.mxu0 0
      %1528 = vmatprep.subr.bf16.mxu0 0
      %1529 = vmatpush1.bf16.msra.mxu0 0
      %1530 = vmatprep.subr.bf16.mxu0 0
      %1531 = vmatpush1.bf16.msra.mxu0 0
      %1532 = vmatprep.subr.bf16.mxu0 0
      %1533 = vmatpush1.bf16.msra.mxu0 0
      %1534 = vmatprep.subr.bf16.mxu0 0
      %1535 = vmatpush1.bf16.msra.mxu0 0
      %1536 = vmatprep.subr.bf16.mxu0 0
      %1537 = vmatpush1.bf16.msra.mxu0 0
      %1538 = vmatprep.subr.bf16.mxu0 0
      %1539 = vmatpush1.bf16.msra.mxu0 0
      %1540 = vmatprep.subr.bf16.mxu0 0
      %1541 = vmatpush1.bf16.msra.mxu0 0
      %1542 = vmatprep.subr.bf16.mxu0 0
      %1543 = vmatpush1.bf16.msra.mxu0 0
      %1544 = vmatprep.subr.bf16.mxu0 0
      %1545 = vmatpush1.bf16.msra.mxu0 0
      %1546 = vmatprep.subr.bf16.mxu0 0
      %1547 = vmatpush1.bf16.msra.mxu0 0
      %1548 = vmatprep.mubr.bf16.mxu0 0
      %1549 = vmatmul.mubr.bf16.gmra.mrb[0].mxu0 %v1511
      %v1550 = vpop.f32.mrb[0].mxu0
      %v1551 = vadd.f32 0.0, %v1550
      %v1552 = vpop.f32.mrb[0].mxu0
      %v1553 = vpop.f32.mrb[0].mxu0
      %v1554 = vpop.f32.mrb[0].mxu0
      %1555 = vdwg.mxu0
      %v1556 = vld [vmem:[%s15] sm:$0xf]
      %v1557 = vpack.c.bf16 %v1247, %v1247
      %1559 = vrot.lane.b32.xlu0 %v1557, 127
      %v1560 = vpop.permute.xlu0 %1559
      %v1562 = vsel %vm700, %v1556, 0
      %v1565 = vsel %vm704, %v1560, 0
      %1567 = vmatprep.subr.bf16.mxu0 0
      %1568 = vmatpush1.bf16.msra.mxu0 %v1565
      %1569 = vmatprep.subr.bf16.mxu0 0
      %1570 = vmatpush1.bf16.msra.mxu0 0
      %1571 = vmatprep.subr.bf16.mxu0 0
      %1572 = vmatpush1.bf16.msra.mxu0 0
      %1573 = vmatprep.subr.bf16.mxu0 0
      %1574 = vmatpush1.bf16.msra.mxu0 0
      %1575 = vmatprep.subr.bf16.mxu0 0
      %1576 = vmatpush1.bf16.msra.mxu0 0
      %1577 = vmatprep.subr.bf16.mxu0 0
      %1578 = vmatpush1.bf16.msra.mxu0 0
      %1579 = vmatprep.subr.bf16.mxu0 0
      %1580 = vmatpush1.bf16.msra.mxu0 0
      %1581 = vmatprep.subr.bf16.mxu0 0
      %1582 = vmatpush1.bf16.msra.mxu0 0
      %1583 = vmatprep.subr.bf16.mxu0 0
      %1584 = vmatpush1.bf16.msra.mxu0 0
      %1585 = vmatprep.subr.bf16.mxu0 0
      %1586 = vmatpush1.bf16.msra.mxu0 0
      %1587 = vmatprep.subr.bf16.mxu0 0
      %1588 = vmatpush1.bf16.msra.mxu0 0
      %1589 = vmatprep.subr.bf16.mxu0 0
      %1590 = vmatpush1.bf16.msra.mxu0 0
      %1591 = vmatprep.subr.bf16.mxu0 0
      %1592 = vmatpush1.bf16.msra.mxu0 0
      %1593 = vmatprep.subr.bf16.mxu0 0
      %1594 = vmatpush1.bf16.msra.mxu0 0
      %1595 = vmatprep.subr.bf16.mxu0 0
      %1596 = vmatpush1.bf16.msra.mxu0 0
      %1597 = vmatprep.subr.bf16.mxu0 0
      %1598 = vmatpush1.bf16.msra.mxu0 0
      %1599 = vmatprep.mubr.bf16.mxu0 0
      %1600 = vmatmul.mubr.bf16.gmra.mrb[0].mxu0 %v1562
      %v1601 = vpop.f32.mrb[0].mxu0
      %v1602 = vadd.f32 0.0, %v1601
      %v1603 = vpop.f32.mrb[0].mxu0
      %v1604 = vpop.f32.mrb[0].mxu0
      %v1605 = vpop.f32.mrb[0].mxu0
      %1606 = vdwg.mxu0
      %v1607 = vld [vmem:[%s13] sm:$0xf]
      %v1608 = vpack.c.bf16 %v1502, %v1502
      %v1609 = vpack.c.bf16 %v1503, %v1503
      %v1610 = vpack.c.bf16 %v1504, %v1504
      %v1611 = vld [vmem:[%s10] sm:$0xff]
      %v1612 = vld [vmem:[%s10 + $0x8] sm:$0xff]
      %v1613 = vld [vmem:[%s10 + $0x10] sm:$0xff]
      %v1614 = vld [vmem:[%s10 + $0x18] sm:$0xff]
      %v1615 = vld [vmem:[%s10 + $0x20] sm:$0xff]
      %v1616 = vld [vmem:[%s10 + $0x28] sm:$0xff]
      %v1617 = vld [vmem:[%s10 + $0x30] sm:$0xff]
      %v1618 = vld [vmem:[%s10 + $0x38] sm:$0xff]
      %v1619 = vpack.c.bf16 %v1602, %v1602
      %v1628 = vunpack.c.l.b16 %v1611
      %v1629 = vunpack.c.h.b16 %v1611
      %v1630 = vunpack.c.l.b16 %v1612
      %v1631 = vunpack.c.h.b16 %v1612
      %v1632 = vunpack.c.l.b16 %v1613
      %v1633 = vunpack.c.h.b16 %v1613
      %v1634 = vunpack.c.l.b16 %v1614
      %v1635 = vunpack.c.h.b16 %v1614
      %v1636 = vunpack.c.l.b16 %v1615
      %v1637 = vunpack.c.h.b16 %v1615
      %v1638 = vunpack.c.l.b16 %v1616
      %v1639 = vunpack.c.h.b16 %v1616
      %v1640 = vunpack.c.l.b16 %v1617
      %v1641 = vunpack.c.h.b16 %v1617
      %v1642 = vunpack.c.l.b16 %v1618
      %v1643 = vunpack.c.h.b16 %v1618
      %v1644 = vpack.c.b16 %v1630, %v1628
      %v1645 = vpack.c.b16 %v1631, %v1629
      %v1646 = vpack.c.b16 %v1634, %v1632
      %v1647 = vpack.c.b16 %v1635, %v1633
      %v1648 = vpack.c.b16 %v1638, %v1636
      %v1649 = vpack.c.b16 %v1639, %v1637
      %v1650 = vpack.c.b16 %v1642, %v1640
      %v1651 = vpack.c.b16 %v1643, %v1641
      %v1661 = vsel %vm975, %v1619, 0
      %1663 = vmatprep.subr.bf16.mxu0 %v1645
      %1664 = vmatpush1.bf16.msra.mxu0 %v1644
      %1665 = vmatprep.subr.bf16.mxu0 %v1647
      %1666 = vmatpush1.bf16.msra.mxu0 %v1646
      %1667 = vmatprep.subr.bf16.mxu0 %v1649
      %1668 = vmatpush1.bf16.msra.mxu0 %v1648
      %1669 = vmatprep.subr.bf16.mxu0 %v1651
      %1670 = vmatpush1.bf16.msra.mxu0 %v1650
      %1671 = vmatprep.subr.bf16.mxu0 0
      %1672 = vmatpush1.bf16.msra.mxu0 0
      %1673 = vmatprep.subr.bf16.mxu0 0
      %1674 = vmatpush1.bf16.msra.mxu0 0
      %1675 = vmatprep.subr.bf16.mxu0 0
      %1676 = vmatpush1.bf16.msra.mxu0 0
      %1677 = vmatprep.subr.bf16.mxu0 0
      %1678 = vmatpush1.bf16.msra.mxu0 0
      %1679 = vmatprep.subr.bf16.mxu0 0
      %1680 = vmatpush1.bf16.msra.mxu0 0
      %1681 = vmatprep.subr.bf16.mxu0 0
      %1682 = vmatpush1.bf16.msra.mxu0 0
      %1683 = vmatprep.subr.bf16.mxu0 0
      %1684 = vmatpush1.bf16.msra.mxu0 0
      %1685 = vmatprep.subr.bf16.mxu0 0
      %1686 = vmatpush1.bf16.msra.mxu0 0
      %1687 = vmatprep.subr.bf16.mxu0 0
      %1688 = vmatpush1.bf16.msra.mxu0 0
      %1689 = vmatprep.subr.bf16.mxu0 0
      %1690 = vmatpush1.bf16.msra.mxu0 0
      %1691 = vmatprep.subr.bf16.mxu0 0
      %1692 = vmatpush1.bf16.msra.mxu0 0
      %1693 = vmatprep.subr.bf16.mxu0 0
      %1694 = vmatpush1.bf16.msra.mxu0 0
      %1695 = vmatprep.mubr.bf16.mxu0 0
      %1696 = vmatmul.mubr.bf16.gmra.mrb[0].mxu0 %v1661
      %v1697 = vpop.f32.mrb[0].mxu0
      %v1698 = vadd.f32 0.0, %v1697
      %v1699 = vpop.f32.mrb[0].mxu0
      %v1700 = vadd.f32 0.0, %v1699
      %v1701 = vpop.f32.mrb[0].mxu0
      %v1702 = vpop.f32.mrb[0].mxu0
      %1703 = vdwg.mxu0
      %1707 = vrot.lane.b32.xlu0 %v1608, 127
      %v1708 = vpop.permute.xlu0 %1707
      %1709 = vrot.lane.b32.xlu0 %v1609, 127
      %v1710 = vpop.permute.xlu0 %1709
      %1711 = vrot.lane.b32.xlu0 %v1610, 127
      %v1712 = vpop.permute.xlu0 %1711
      %vm1713 = vcmask 1039360
      %v1714 = vsel %vm1713, %v1708, %v1710
      %v1715 = vsel %vm1713, %v1710, %v1712
      %v1717 = vsel %vm700, %v1607, 0
      %v1720 = vsel %vm704, %v1714, 0
      %v1723 = vsel %vm704, %v1715, 0
      %1725 = vmatprep.subr.bf16.mxu0 %v1723
      %1726 = vmatpush1.bf16.msra.mxu0 %v1720
      %1727 = vmatprep.subr.bf16.mxu0 0
      %1728 = vmatpush1.bf16.msra.mxu0 0
      %1729 = vmatprep.subr.bf16.mxu0 0
      %1730 = vmatpush1.bf16.msra.mxu0 0
      %1731 = vmatprep.subr.bf16.mxu0 0
      %1732 = vmatpush1.bf16.msra.mxu0 0
      %1733 = vmatprep.subr.bf16.mxu0 0
      %1734 = vmatpush1.bf16.msra.mxu0 0
      %1735 = vmatprep.subr.bf16.mxu0 0
      %1736 = vmatpush1.bf16.msra.mxu0 0
      %1737 = vmatprep.subr.bf16.mxu0 0
      %1738 = vmatpush1.bf16.msra.mxu0 0
      %1739 = vmatprep.subr.bf16.mxu0 0
      %1740 = vmatpush1.bf16.msra.mxu0 0
      %1741 = vmatprep.subr.bf16.mxu0 0
      %1742 = vmatpush1.bf16.msra.mxu0 0
      %1743 = vmatprep.subr.bf16.mxu0 0
      %1744 = vmatpush1.bf16.msra.mxu0 0
      %1745 = vmatprep.subr.bf16.mxu0 0
      %1746 = vmatpush1.bf16.msra.mxu0 0
      %1747 = vmatprep.subr.bf16.mxu0 0
      %1748 = vmatpush1.bf16.msra.mxu0 0
      %1749 = vmatprep.subr.bf16.mxu0 0
      %1750 = vmatpush1.bf16.msra.mxu0 0
      %1751 = vmatprep.subr.bf16.mxu0 0
      %1752 = vmatpush1.bf16.msra.mxu0 0
      %1753 = vmatprep.subr.bf16.mxu0 0
      %1754 = vmatpush1.bf16.msra.mxu0 0
      %1755 = vmatprep.subr.bf16.mxu0 0
      %1756 = vmatpush1.bf16.msra.mxu0 0
      %1757 = vmatprep.mubr.bf16.mxu0 0
      %1758 = vmatmul.mubr.bf16.gmra.mrb[0].mxu0 %v1717
      %v1759 = vpop.f32.mrb[0].mxu0
      %v1760 = vadd.f32 %v1698, %v1759
      %v1761 = vpop.f32.mrb[0].mxu0
      %v1762 = vadd.f32 %v1700, %v1761
      %v1763 = vpop.f32.mrb[0].mxu0
      %v1764 = vpop.f32.mrb[0].mxu0
      %1765 = vdwg.mxu0
      %v1766 = vld [vmem:[%s11] sm:$0xff]
      %v1767 = vld [vmem:[%s11 + $0x8] sm:$0xff]
      %v1768 = vpack.c.bf16 %v1551, %v1551
      %v1771 = vunpack.c.l.b16 %v1766
      %v1772 = vunpack.c.h.b16 %v1766
      %v1773 = vunpack.c.l.b16 %v1767
      %v1774 = vunpack.c.h.b16 %v1767
      %v1775 = vpack.c.b16 %v1773, %v1771
      %v1776 = vpack.c.b16 %v1774, %v1772
      %v1780 = vsel %vm882, %v1768, 0
      %1782 = vmatprep.subr.bf16.mxu0 %v1776
      %1783 = vmatpush1.bf16.msra.mxu0 %v1775
      %1784 = vmatprep.subr.bf16.mxu0 0
      %1785 = vmatpush1.bf16.msra.mxu0 0
      %1786 = vmatprep.subr.bf16.mxu0 0
      %1787 = vmatpush1.bf16.msra.mxu0 0
      %1788 = vmatprep.subr.bf16.mxu0 0
      %1789 = vmatpush1.bf16.msra.mxu0 0
      %1790 = vmatprep.subr.bf16.mxu0 0
      %1791 = vmatpush1.bf16.msra.mxu0 0
      %1792 = vmatprep.subr.bf16.mxu0 0
      %1793 = vmatpush1.bf16.msra.mxu0 0
      %1794 = vmatprep.subr.bf16.mxu0 0
      %1795 = vmatpush1.bf16.msra.mxu0 0
      %1796 = vmatprep.subr.bf16.mxu0 0
      %1797 = vmatpush1.bf16.msra.mxu0 0
      %1798 = vmatprep.subr.bf16.mxu0 0
      %1799 = vmatpush1.bf16.msra.mxu0 0
      %1800 = vmatprep.subr.bf16.mxu0 0
      %1801 = vmatpush1.bf16.msra.mxu0 0
      %1802 = vmatprep.subr.bf16.mxu0 0
      %1803 = vmatpush1.bf16.msra.mxu0 0
      %1804 = vmatprep.subr.bf16.mxu0 0
      %1805 = vmatpush1.bf16.msra.mxu0 0
      %1806 = vmatprep.subr.bf16.mxu0 0
      %1807 = vmatpush1.bf16.msra.mxu0 0
      %1808 = vmatprep.subr.bf16.mxu0 0
      %1809 = vmatpush1.bf16.msra.mxu0 0
      %1810 = vmatprep.subr.bf16.mxu0 0
      %1811 = vmatpush1.bf16.msra.mxu0 0
      %1812 = vmatprep.subr.bf16.mxu0 0
      %1813 = vmatpush1.bf16.msra.mxu0 0
      %1814 = vmatprep.mubr.bf16.mxu0 0
      %1815 = vmatmul.mubr.bf16.gmra.mrb[0].mxu0 %v1780
      %v1816 = vpop.f32.mrb[0].mxu0
      %v1817 = vadd.f32 0.0, %v1816
      %v1818 = vpop.f32.mrb[0].mxu0
      %v1819 = vadd.f32 0.0, %v1818
      %v1820 = vpop.f32.mrb[0].mxu0
      %v1821 = vpop.f32.mrb[0].mxu0
      %1822 = vdwg.mxu0
      %v1823 = vadd.f32 %v1760, %v1817
      %v1824 = vadd.f32 %v1762, %v1819
      %1825 = vst [vmem:[%s690] sm:$0xff] %v1823
      %1826 = vst [vmem:[%s690 + $0x8] sm:$0xff] %v1824
      %p1827 = scmp.lt.s32.totalorder %s32, 1
      %s1828 = scalar_select %p1827, %s32, 1
      %s1829 = smul.addr %s1828, 2
      %s1830 = smul.addr %s1829, 8
      %s1831 = scalar_lea.vmem %s21, %s1830
      // Predicated region
      $region105: #{fpn_forward.1} parent=103 // pred_check
        %p1832 = pneg %p506
      $region106: #{fpn_forward.1} parent=103 // pred_check_branch
        %1834 = sbr.rel (%p1832) target = $region108
      $region107: #{fpn_forward.1} parent=103 // pred_region
        _
      $region108: #{fpn_forward.1} parent=103 // pred_fallthru
        _
    $region104: #{fpn_forward.1} parent=5 // pred_fallthru
      _
    %p1835 = scmp.le.s32.totalorder 2, %s27
    // Predicated region
    $region109: #{fpn_forward.1} parent=5 // pred_check
      %p1836 = pneg %p1835
    $region110: #{fpn_forward.1} parent=5 // pred_check_branch
      %1838 = sbr.rel (%p1836) target = $region112
    $region111: #{fpn_forward.1} parent=5 // pred_region
      %s1839 = ssub.s32 %s27, 2
      // Predicated region
      $region113: #{fpn_forward.1} parent=111 // pred_check
        %p1840 = pneg %p512
      $region114: #{fpn_forward.1} parent=111 // pred_check_branch
        %1842 = sbr.rel (%p1840) target = $region116
      $region115: #{fpn_forward.1} parent=111 // pred_region
        %p1843 = scmp.lt.s32.totalorder %s33, 1
        %s1844 = scalar_select %p1843, %s33, 1
        %s1845 = smul.addr %s1844, 2
        %s1846 = smul.addr %s1845, 8
        %s1847 = scalar_lea.vmem %s21, %s1846
      $region116: #{fpn_forward.1} parent=111 // pred_fallthru
        _
    $region112: #{fpn_forward.1} parent=5 // pred_fallthru
      _
  $region6: #{fpn_forward.1} parent=0 // loop_footer
    %s31 = sadd.s32 1, %s27
  $region7: #{fpn_forward.1} parent=0 // loop_footer_branch
    %26 = sbr.rel target = $region3
  $region8: #{fpn_forward.1} parent=0 // loop_exit
    _

</llo_original>
